<compile_context>
chip_gen: v7x
topology: tpu7x:2x2x1
jax: 0.10.0
libtpu: 0.0.40
codegen_flags: <defaults>
</compile_context>

<pallas_src>
import functools
import math

import jax
import jax.numpy as jnp
import numpy as np
from jax import lax
from jax.experimental import pallas as pl
from jax.experimental.pallas import tpu as pltpu

_BN_EPS = 1e-5
_LANE = 128


def _round_up(x, m):
    return (x + m - 1) // m * m


def _vmem_limit_bytes():
    # v5e / v6e have 128 MiB VMEM per TensorCore, v7x only 64 MiB.  With the
    # row-tiled working set we can scope ~3/4 of physical VMEM (48 MiB on v7x,
    # ~96 MiB on v5e/v6e), leaving room for Mosaic-internal scratch.
    cap = 64 * 1024 * 1024
    try:
        cap = int(pltpu.get_tpu_info().vmem_capacity_bytes)
    except Exception:
        pass
    if cap < 16 * 1024 * 1024:
        cap = 64 * 1024 * 1024
    return int(min(cap * 3 // 4, 100 * 1024 * 1024))


_VMEM_LIMIT = _vmem_limit_bytes()


def _pick_tile_rows(H, W, Cin, Cout, out_itemsize):
    """Largest row-tile TH (divisor of H, <= 64) whose working set fits VMEM."""
    cin_l = _round_up(Cin, _LANE)            # lane padding of the input block
    q_l = _round_up(3 * Cin, _LANE)          # lane padding of the q scratch
    cout_l = _round_up(Cout, _LANE)
    w_bytes = 3 * (3 * Cin) * Cout * 2       # folded bf16 weight slab
    budget = _VMEM_LIMIT - 2 * w_bytes - 8 * 1024 * 1024   # 2x: double-buffered
    budget = max(budget, 2 * 1024 * 1024)
    # per output row: x block (x2 buffers) + q scratch + ~2 live f32 matmul
    # buffers + output block (x2 buffers)
    per_row = W * (2 * cin_l * 2 + q_l * 2 + 2 * cout_l * 4 + 2 * cout_l * out_itemsize)
    th = max(int(budget // max(per_row, 1)), 1)
    th = min(th, H, 64)
    while H % th:
        th -= 1
    return th


# ----------------------------------------------------------------------------
# Pallas kernel: fused 3x3 conv (padding=1) + BN affine + activation
# ----------------------------------------------------------------------------
def _conv3x3_kernel(x_ref, xt_ref, xb_ref, w_ref, s_ref, b_ref, o_ref, q_ref,
                    *, TH, W, Cin, Cout, act):
    """One (batch, row-block) grid step.

    x_ref : (1, TH, W, Cin)   bf16, the TH rows this step produces
    xt_ref: (1, 1, W, Cin)    bf16, row above the tile (clamped at the top edge)
    xb_ref: (1, 1, W, Cin)    bf16, row below the tile (clamped at bottom edge)
    w_ref : (3, 3*Cin, Cout)  bf16 folded weights, w[kx, ky*Cin + c, co]
    s_ref/b_ref: (1, Cout)    f32 fused BN scale / bias
    o_ref : (1, TH, W, Cout)  bf16 (hidden layers) or f32 (final layer)
    q_ref : (TH, W, 3*Cin)    bf16 VMEM scratch (ky-folded input)
    """
    r = pl.program_id(1)
    n_row_blocks = pl.num_programs(1)

    x = x_ref[0]                                          # (TH, W, Cin)
    zero_row = jnp.zeros((W, Cin), x.dtype)
    # padding=1 in H: the clamped halo rows are zeroed at the image edges.
    top = jnp.where(r > 0, xt_ref[0, 0], zero_row)
    bot = jnp.where(r < n_row_blocks - 1, xb_ref[0, 0], zero_row)

    # ---- ky fold, written in place into the q scratch -----------------------
    # q[h, w, ky*Cin + c] = x[h + ky - 1, w, c]   (zero outside the image)
    q_ref[0:1, :, 0:Cin] = top[None]
    if TH > 1:
        q_ref[1:TH, :, 0:Cin] = x[:TH - 1]
        q_ref[0:TH - 1, :, 2 * Cin:3 * Cin] = x[1:]
    q_ref[:, :, Cin:2 * Cin] = x
    q_ref[TH - 1:TH, :, 2 * Cin:3 * Cin] = bot[None]

    P = TH * W
    q = q_ref[...].reshape(P, 3 * Cin)

    # ---- 3 MXU matmuls (one per horizontal tap kx), K = 3*Cin, f32 acc ------
    # out[h, w] = z0[h, w-1] + z1[h, w] + z2[h, w+1].  Side taps are shifted
    # along the flattened row axis with zero-padded concats and accumulated
    # immediately, keeping at most ~2 f32 (P, Cout) buffers live at a time.
    acc = jnp.dot(q, w_ref[1], preferred_element_type=jnp.float32)      # kx = 1
    if W > 1:
        col = lax.broadcasted_iota(jnp.int32, (P, 1), 0) % W
        zpad = jnp.zeros((1, Cout), jnp.float32)
        z0 = jnp.dot(q, w_ref[0], preferred_element_type=jnp.float32)   # kx = 0
        zl = jnp.concatenate([zpad, z0[:P - 1]], axis=0)                # z0[p-1]
        acc = acc + jnp.where(col > 0, zl, 0.0)
        z2 = jnp.dot(q, w_ref[2], preferred_element_type=jnp.float32)   # kx = 2
        zr = jnp.concatenate([z2[1:], zpad], axis=0)                    # z2[p+1]
        acc = acc + jnp.where(col < W - 1, zr, 0.0)

    # ---- BN affine + activation epilogue (kept in f32) ----------------------
    y = acc * s_ref[...] + b_ref[...]
    if act == "relu":
        y = jnp.maximum(y, 0.0)
    else:
        y = jax.nn.sigmoid(y)          # exact sigmoid (matches torch.sigmoid)
    o_ref[...] = y.reshape(1, TH, W, Cout).astype(o_ref.dtype)


def conv3x3_bn_act(x, w, scale, bias, act, out_dtype=jnp.bfloat16, tile_rows=None):
    """x: (N, H, W, Cin) bf16, w: (3, 3*Cin, Cout) bf16, scale/bias: (1, Cout) f32."""
    N, H, W, Cin = x.shape
    Cout = w.shape[-1]

    # Narrow final layer (output_nc channels): lane-pad Cout to 128 so the MXU
    # tile and the output store stay lane-dense, slice real channels back off.
    Cout_p = Cout
    if Cout < 16:
        Cout_p = _LANE
        w = jnp.pad(w, ((0, 0), (0, 0), (0, Cout_p - Cout)))
        scale = jnp.pad(scale, ((0, 0), (0, Cout_p - Cout)))
        bias = jnp.pad(bias, ((0, 0), (0, Cout_p - Cout)))

    out_itemsize = jnp.dtype(out_dtype).itemsize
    if tile_rows is not None and H % tile_rows == 0:
        TH = tile_rows
    else:
        TH = _pick_tile_rows(H, W, Cin, Cout_p, out_itemsize)
    RB = H // TH

    kern = functools.partial(_conv3x3_kernel, TH=TH, W=W, Cin=Cin, Cout=Cout_p, act=act)

    flops = 2 * 9 * N * H * W * Cin * Cout_p
    transcendentals = N * H * W * Cout_p if act == "sigmoid" else 0
    halo_bytes = (N * RB * 2 * W * Cin * 2) if RB > 1 else 0
    bytes_accessed = (N * H * W * Cin * 2 + halo_bytes
                      + 3 * 3 * Cin * Cout_p * 2 + 2 * Cout_p * 4
                      + N * H * W * Cout_p * out_itemsize)

    out = pl.pallas_call(
        kern,
        out_shape=jax.ShapeDtypeStruct((N, H, W, Cout_p), out_dtype),
        grid=(N, RB),
        in_specs=[
            # main TH-row tile of the image
            pl.BlockSpec((1, TH, W, Cin), lambda n, r: (n, r, 0, 0)),
            # 1-row halos above / below the tile.  Block size along H is 1, so
            # the block index is the row index; clamped at the image edges and
            # masked to zero inside the kernel (realizes padding=1 in H).
            pl.BlockSpec((1, 1, W, Cin),
                         lambda n, r: (n, jnp.maximum(r * TH - 1, 0), 0, 0)),
            pl.BlockSpec((1, 1, W, Cin),
                         lambda n, r: (n, jnp.minimum(r * TH + TH, H - 1), 0, 0)),
            # grid-invariant weight / scale / bias (fetched once by the pipeline)
            pl.BlockSpec((3, 3 * Cin, Cout_p), lambda n, r: (0, 0, 0)),
            pl.BlockSpec((1, Cout_p), lambda n, r: (0, 0)),
            pl.BlockSpec((1, Cout_p), lambda n, r: (0, 0)),
        ],
        out_specs=pl.BlockSpec((1, TH, W, Cout_p), lambda n, r: (n, r, 0, 0)),
        scratch_shapes=[pltpu.VMEM((TH, W, 3 * Cin), jnp.bfloat16)],
        compiler_params=pltpu.CompilerParams(
            # (batch, row-block) steps are independent -> both axes parallel
            dimension_semantics=("parallel", "parallel"),
            vmem_limit_bytes=_VMEM_LIMIT,
        ),
        cost_estimate=pl.CostEstimate(flops=flops,
                                      transcendentals=transcendentals,
                                      bytes_accessed=bytes_accessed),
    )(x, x, x, w, scale, bias)
    if Cout_p != Cout:
        out = out[..., :Cout]
    return out


# ----------------------------------------------------------------------------
# Max-pool (2x2, stride 2) with argmax indices + max-unpool  (plain JAX glue)
# ----------------------------------------------------------------------------
def max_pool2x2(x):
    # x: (N, H, W, C) -> (pooled, idx in {0..3} row-major within the 2x2 window)
    # Ties keep the first occurrence (PyTorch may pick a different index on
    # exact ties, but the pool->unpool composite semantics match).
    N, H, W, C = x.shape
    xr = x.reshape(N, H // 2, 2, W // 2, 2, C)
    cands = [xr[:, :, 0, :, 0, :], xr[:, :, 0, :, 1, :],
             xr[:, :, 1, :, 0, :], xr[:, :, 1, :, 1, :]]
    m = cands[0]
    idx = jnp.zeros(m.shape, jnp.int32)
    for k in (1, 2, 3):
        upd = cands[k] > m
        m = jnp.where(upd, cands[k], m)
        idx = jnp.where(upd, k, idx)
    return m, idx


def max_unpool2x2(v, idx):
    # v, idx: (N, H, W, C) -> (N, 2H, 2W, C); value placed at its recorded slot
    N, H, W, C = v.shape
    out = jnp.zeros((N, H, 2, W, 2, C), v.dtype)
    for k in range(4):
        dr, dc = k // 2, k % 2
        out = out.at[:, :, dr, :, dc, :].set(jnp.where(idx == k, v, 0.0))
    return out.reshape(N, 2 * H, 2 * W, C)


# ----------------------------------------------------------------------------
# Parameters (deterministic synthetic init; BN in eval mode, default stats)
# ----------------------------------------------------------------------------
def fold_conv_weight(w_hwio):
    """(3, 3, Cin, Cout) HWIO f32 -> (3[kx], 3*Cin[ky*Cin + c], Cout) bf16 slab."""
    kh, kw, cin, cout = w_hwio.shape
    assert kh == 3 and kw == 3
    return jnp.transpose(w_hwio, (1, 0, 2, 3)).reshape(3, 3 * cin, cout).astype(jnp.bfloat16)


def _layer_cfg(input_nc, output_nc):
    return [
        ("conv11", input_nc, 64, True), ("conv12", 64, 64, True),
        ("conv21", 64, 128, True), ("conv22", 128, 128, True),
        ("conv31", 128, 256, True), ("conv32", 256, 256, True), ("conv33", 256, 256, True),
        ("conv41", 256, 512, True), ("conv42", 512, 512, True), ("conv43", 512, 512, True),
        ("conv51", 512, 512, True), ("conv52", 512, 512, True), ("conv53", 512, 512, True),
        ("conv53d", 512, 512, True), ("conv52d", 512, 512, True), ("conv51d", 512, 512, True),
        ("conv43d", 512, 512, True), ("conv42d", 512, 512, True), ("conv41d", 512, 256, True),
        ("conv33d", 256, 256, True), ("conv32d", 256, 256, True), ("conv31d", 256, 128, True),
        ("conv22d", 128, 128, True), ("conv21d", 128, 64, True),
        ("conv12d", 64, 64, True),
        ("conv11d", 64, output_nc, False),   # final conv has no BN
    ]


def init_segnet_params(key, input_nc, output_nc):
    cfg = _layer_cfg(input_nc, output_nc)
    keys = jax.random.split(key, len(cfg))
    params = {}
    for (name, cin, cout, has_bn), k in zip(cfg, keys):
        kw, kb = jax.random.split(k)
        w = jax.random.normal(kw, (3, 3, cin, cout), jnp.float32) * math.sqrt(2.0 / (9 * cin))
        b = jax.random.normal(kb, (cout,), jnp.float32) * 0.01
        if has_bn:
            # BN eval with gamma=1, beta=0, mean=0, var=1: y = (conv + b) * s
            s = jnp.full((1, cout), 1.0 / math.sqrt(1.0 + _BN_EPS), jnp.float32)
            fb = (b * s[0]).reshape(1, cout)
        else:
            s = jnp.ones((1, cout), jnp.float32)
            fb = b.reshape(1, cout)
        params[name] = (fold_conv_weight(w), s, fb)
    return params


# ----------------------------------------------------------------------------
# Forward pass (mirrors Segnet.forward)
# ----------------------------------------------------------------------------
def segnet_forward(params, x):
    """x: (N, H, W, input_nc). Returns (N, H, W, output_nc) float32."""
    h = x.astype(jnp.bfloat16)

    def block(h, names):
        for nm in names:
            w, s, b = params[nm]
            h = conv3x3_bn_act(h, w, s, b, act="relu")
        return h

    x12 = block(h, ["conv11", "conv12"])
    x1p, id1 = max_pool2x2(x12)
    x22 = block(x1p, ["conv21", "conv22"])
    x2p, id2 = max_pool2x2(x22)
    x33 = block(x2p, ["conv31", "conv32", "conv33"])
    x3p, id3 = max_pool2x2(x33)
    x43 = block(x3p, ["conv41", "conv42", "conv43"])
    x4p, id4 = max_pool2x2(x43)
    x53 = block(x4p, ["conv51", "conv52", "conv53"])
    x5p, id5 = max_pool2x2(x53)

    x5d = max_unpool2x2(x5p, id5)
    x51d = block(x5d, ["conv53d", "conv52d", "conv51d"])
    x4d = max_unpool2x2(x51d, id4)
    x41d = block(x4d, ["conv43d", "conv42d", "conv41d"])
    x3d = max_unpool2x2(x41d, id3)
    x31d = block(x3d, ["conv33d", "conv32d", "conv31d"])
    x2d = max_unpool2x2(x31d, id2)
    x21d = block(x2d, ["conv22d", "conv21d"])
    x1d = max_unpool2x2(x21d, id1)
    x12d = block(x1d, ["conv12d"])

    w, s, b = params["conv11d"]
    return conv3x3_bn_act(x12d, w, s, b, act="sigmoid", out_dtype=jnp.float32)


# ----------------------------------------------------------------------------
# Pure-JAX reference for the fused conv op (numerics matched: bf16 in, f32 acc)
# ----------------------------------------------------------------------------
def _conv_ref(x, w_hwio, scale, bias, act, out_dtype):
    y = lax.conv_general_dilated(
        x.astype(jnp.bfloat16), w_hwio.astype(jnp.bfloat16),
        window_strides=(1, 1), padding=((1, 1), (1, 1)),
        dimension_numbers=("NHWC", "HWIO", "NHWC"),
        preferred_element_type=jnp.float32)
    y = y * scale.reshape(1, 1, 1, -1) + bias.reshape(1, 1, 1, -1)
    if act == "relu":
        y = jnp.maximum(y, 0.0)
    else:
        y = jax.nn.sigmoid(y)
    return y.astype(out_dtype)


def _check_conv_op(key, shape, cin, cout, act, tile_rows):
    n, h, w = shape
    kx, kw, kb = jax.random.split(key, 3)
    x = jax.random.normal(kx, (n, h, w, cin), jnp.float32).astype(jnp.bfloat16)
    w_hwio = jax.random.normal(kw, (3, 3, cin, cout), jnp.float32) * math.sqrt(2.0 / (9 * cin))
    scale = jnp.full((1, cout), 0.9, jnp.float32)
    bias = jax.random.normal(kb, (1, cout), jnp.float32) * 0.1
    out_dtype = jnp.float32 if act == "sigmoid" else jnp.bfloat16

    got = conv3x3_bn_act(x, fold_conv_weight(w_hwio), scale, bias, act,
                         out_dtype, tile_rows=tile_rows)
    want = _conv_ref(x, w_hwio, scale, bias, act, out_dtype)
    np.testing.assert_allclose(
        np.asarray(jnp.asarray(got, jnp.float32)),
        np.asarray(jnp.asarray(want, jnp.float32)),
        rtol=0.03, atol=0.03)


# ----------------------------------------------------------------------------
if __name__ == "__main__":
    key = jax.random.PRNGKey(0)
    kp, kx, kc = jax.random.split(key, 3)

    # Unit-check the fused Pallas conv kernel against a pure-JAX reference on a
    # few representative shapes (multi-row-block halos, tiny maps, final layer).
    checks = [
        ((2, 16, 16), 3, 64, "relu", 8),      # first layer Cin=3, 2 row blocks
        ((1, 16, 8), 64, 128, "relu", 4),     # 4 row blocks -> interior halos
        ((1, 8, 8), 128, 64, "relu", None),   # auto tiling
        ((1, 2, 2), 128, 256, "relu", None),  # tiny feature map
        ((1, 1, 1), 64, 64, "relu", None),    # degenerate 1x1 feature map
        ((1, 16, 16), 64, 2, "sigmoid", 8),   # final layer: tiny Cout + sigmoid
    ]
    for i, (shape, cin, cout, act, trows) in enumerate(checks):
        _check_conv_op(jax.random.fold_in(kc, i), shape, cin, cout, act, trows)

    # Full SegNet forward at small shapes (5 maxpools -> spatial % 32 == 0).
    N, input_nc, H, W = 2, 3, 32, 32
    output_nc = 2
    params = init_segnet_params(kp, input_nc, output_nc)

    x_nchw = jax.random.normal(kx, (N, input_nc, H, W), jnp.float32)   # PyTorch-style input
    x_nhwc = jnp.transpose(x_nchw, (0, 2, 3, 1))

    fwd = jax.jit(segnet_forward)
    out_nhwc = jax.block_until_ready(fwd(params, x_nhwc))
    out_nchw = jnp.transpose(out_nhwc, (0, 3, 1, 2))   # back to NCHW like PyTorch

    assert out_nchw.shape == (N, output_nc, H, W)
    assert out_nchw.dtype == jnp.float32
    assert bool(jnp.all(jnp.isfinite(out_nchw)))
    assert bool(jnp.all((out_nchw >= 0.0) & (out_nchw <= 1.0)))   # sigmoid range
    print("KERNEL_OK")
</pallas_src>

<mosaic_0001>
module attributes {stable_mosaic.version = 11 : i64} {
  func.func @_conv3x3_kernel(%arg0: i32, %arg1: i32, %arg2: memref<1x8x16x3xbf16, #tpu.memory_space<vmem>>, %arg3: memref<1x1x16x3xbf16, #tpu.memory_space<vmem>>, %arg4: memref<1x1x16x3xbf16, #tpu.memory_space<vmem>>, %arg5: memref<3x9x64xbf16, #tpu.memory_space<vmem>>, %arg6: memref<1x64xf32, #tpu.memory_space<vmem>>, %arg7: memref<1x64xf32, #tpu.memory_space<vmem>>, %arg8: memref<1x8x16x64xbf16, #tpu.memory_space<vmem>>, %arg9: memref<8x16x9xbf16, #tpu.memory_space<vmem>>) attributes {dimension_semantics = [#tpu.dimension_semantics<parallel>, #tpu.dimension_semantics<parallel>], iteration_bounds = array<i64: 2, 2>, scalar_prefetch = 0 : i64, scratch_operands = 1 : i64, tpu.core_type = #tpu.core_type<tc>, window_params = [{transform_indices = @transform_0, window_bounds = array<i64: 1, 8, 16, 3>}, {transform_indices = @transform_1, window_bounds = array<i64: 1, 1, 16, 3>}, {transform_indices = @transform_2, window_bounds = array<i64: 1, 1, 16, 3>}, {pipeline_mode = #tpu.pipeline_mode<synchronous>, transform_indices = @transform_3, window_bounds = array<i64: 3, 9, 64>}, {pipeline_mode = #tpu.pipeline_mode<synchronous>, transform_indices = @transform_4, window_bounds = array<i64: 1, 64>}, {pipeline_mode = #tpu.pipeline_mode<synchronous>, transform_indices = @transform_5, window_bounds = array<i64: 1, 64>}, {transform_indices = @transform_6, window_bounds = array<i64: 1, 8, 16, 64>}]} {
    %c0 = arith.constant 0 : index
    %c0_0 = arith.constant 0 : index
    %c0_1 = arith.constant 0 : index
    %c0_2 = arith.constant 0 : index
    %0 = vector.load %arg2[%c0, %c0_0, %c0_1, %c0_2] : memref<1x8x16x3xbf16, #tpu.memory_space<vmem>>, vector<1x8x16x3xbf16>
    %1 = vector.shape_cast %0 : vector<1x8x16x3xbf16> to vector<8x16x3xbf16>
    %cst = arith.constant 0.000000e+00 : bf16
    %2 = vector.broadcast %cst : bf16 to vector<16x3xbf16>
    %c0_i32 = arith.constant 0 : i32
    %3 = arith.cmpi sgt, %arg1, %c0_i32 : i32
    %c0_3 = arith.constant 0 : index
    %c0_4 = arith.constant 0 : index
    %c0_5 = arith.constant 0 : index
    %c0_6 = arith.constant 0 : index
    %4 = vector.load %arg3[%c0_3, %c0_4, %c0_5, %c0_6] : memref<1x1x16x3xbf16, #tpu.memory_space<vmem>>, vector<1x1x16x3xbf16>
    %5 = vector.shape_cast %4 : vector<1x1x16x3xbf16> to vector<16x3xbf16>
    %6 = arith.select %3, %5, %2 : vector<16x3xbf16>
    %c1_i32 = arith.constant 1 : i32
    %7 = arith.cmpi slt, %arg1, %c1_i32 : i32
    %c0_7 = arith.constant 0 : index
    %c0_8 = arith.constant 0 : index
    %c0_9 = arith.constant 0 : index
    %c0_10 = arith.constant 0 : index
    %8 = vector.load %arg4[%c0_7, %c0_8, %c0_9, %c0_10] : memref<1x1x16x3xbf16, #tpu.memory_space<vmem>>, vector<1x1x16x3xbf16>
    %9 = vector.shape_cast %8 : vector<1x1x16x3xbf16> to vector<16x3xbf16>
    %10 = arith.select %7, %9, %2 : vector<16x3xbf16>
    %11 = vector.shape_cast %6 : vector<16x3xbf16> to vector<1x16x3xbf16>
    %c0_11 = arith.constant 0 : index
    %c0_12 = arith.constant 0 : index
    %c0_13 = arith.constant 0 : index
    %12 = vector.load %arg9[%c0_11, %c0_12, %c0_13] : memref<8x16x9xbf16, #tpu.memory_space<vmem>>, vector<1x16x3xbf16>
    tpu.vector_store %arg9[%c0_11, %c0_12, %c0_13], %11 {strides = array<i32>} : memref<8x16x9xbf16, #tpu.memory_space<vmem>>, vector<1x16x3xbf16>,
    %13 = vector.extract_strided_slice %1 {offsets = [0, 0, 0], sizes = [7, 16, 3], strides = [1, 1, 1]} : vector<8x16x3xbf16> to vector<7x16x3xbf16>
    %c1 = arith.constant 1 : index
    %c0_14 = arith.constant 0 : index
    %c0_15 = arith.constant 0 : index
    %14 = vector.load %arg9[%c1, %c0_14, %c0_15] : memref<8x16x9xbf16, #tpu.memory_space<vmem>>, vector<7x16x3xbf16>
    tpu.vector_store %arg9[%c1, %c0_14, %c0_15], %13 {strides = array<i32>} : memref<8x16x9xbf16, #tpu.memory_space<vmem>>, vector<7x16x3xbf16>,
    %15 = vector.extract_strided_slice %1 {offsets = [1, 0, 0], sizes = [7, 16, 3], strides = [1, 1, 1]} : vector<8x16x3xbf16> to vector<7x16x3xbf16>
    %c0_16 = arith.constant 0 : index
    %c0_17 = arith.constant 0 : index
    %c6 = arith.constant 6 : index
    %16 = vector.load %arg9[%c0_16, %c0_17, %c6] : memref<8x16x9xbf16, #tpu.memory_space<vmem>>, vector<7x16x3xbf16>
    tpu.vector_store %arg9[%c0_16, %c0_17, %c6], %15 {strides = array<i32>} : memref<8x16x9xbf16, #tpu.memory_space<vmem>>, vector<7x16x3xbf16>,
    %c0_18 = arith.constant 0 : index
    %c0_19 = arith.constant 0 : index
    %c3 = arith.constant 3 : index
    %17 = vector.load %arg9[%c0_18, %c0_19, %c3] : memref<8x16x9xbf16, #tpu.memory_space<vmem>>, vector<8x16x3xbf16>
    tpu.vector_store %arg9[%c0_18, %c0_19, %c3], %1 {strides = array<i32>} : memref<8x16x9xbf16, #tpu.memory_space<vmem>>, vector<8x16x3xbf16>,
    %18 = vector.shape_cast %10 : vector<16x3xbf16> to vector<1x16x3xbf16>
    %c7 = arith.constant 7 : index
    %c0_20 = arith.constant 0 : index
    %c6_21 = arith.constant 6 : index
    %19 = vector.load %arg9[%c7, %c0_20, %c6_21] : memref<8x16x9xbf16, #tpu.memory_space<vmem>>, vector<1x16x3xbf16>
    tpu.vector_store %arg9[%c7, %c0_20, %c6_21], %18 {strides = array<i32>} : memref<8x16x9xbf16, #tpu.memory_space<vmem>>, vector<1x16x3xbf16>,
    %c0_22 = arith.constant 0 : index
    %c0_23 = arith.constant 0 : index
    %c0_24 = arith.constant 0 : index
    %20 = vector.load %arg9[%c0_22, %c0_23, %c0_24] : memref<8x16x9xbf16, #tpu.memory_space<vmem>>, vector<8x16x9xbf16>
    %21 = vector.shape_cast %20 : vector<8x16x9xbf16> to vector<128x9xbf16>
    %c1_25 = arith.constant 1 : index
    %c0_26 = arith.constant 0 : index
    %c0_27 = arith.constant 0 : index
    %22 = vector.load %arg5[%c1_25, %c0_26, %c0_27] : memref<3x9x64xbf16, #tpu.memory_space<vmem>>, vector<1x9x64xbf16>
    %23 = vector.shape_cast %22 : vector<1x9x64xbf16> to vector<9x64xbf16>
    %cst_28 = arith.constant dense<0.000000e+00> : vector<128x64xf32>
    %24 = tpu.matmul %21, %23, %cst_28 {dimension_numbers = #tpu.dot_dimension_numbers<[1], [0], [0], [1], [0, 0, 1, 1], [], []>} : vector<128x9xbf16>, vector<9x64xbf16>, vector<128x64xf32> -> vector<128x64xf32>
    %25 = tpu.iota {dimensions = array<i32: 0>} : vector<128x1xi32>
    %c16_i32 = arith.constant 16 : i32
    %c0_i32_29 = arith.constant 0 : i32
    %26 = arith.cmpi eq, %c16_i32, %c0_i32_29 : i32
    %c1_i32_30 = arith.constant 1 : i32
    %27 = arith.select %26, %c1_i32_30, %c16_i32 : i32
    %28 = vector.broadcast %27 : i32 to vector<128x1xi32>
    %29 = arith.remsi %25, %28 : vector<128x1xi32>
    %c0_i32_31 = arith.constant 0 : i32
    %30 = vector.broadcast %c0_i32_31 : i32 to vector<128x1xi32>
    %31 = arith.cmpi ne, %29, %30 : vector<128x1xi32>
    %c0_i32_32 = arith.constant 0 : i32
    %32 = vector.broadcast %c0_i32_32 : i32 to vector<128x1xi32>
    %33 = arith.cmpi slt, %29, %32 : vector<128x1xi32>
    %c0_i32_33 = arith.constant 0 : i32
    %34 = arith.cmpi slt, %27, %c0_i32_33 : i32
    %35 = vector.broadcast %34 : i1 to vector<128x1xi1>
    %36 = vector.broadcast %35 : vector<128x1xi1> to vector<128x1xi1>
    %37 = arith.xori %33, %36 : vector<128x1xi1>
    %38 = arith.andi %37, %31 : vector<128x1xi1>
    %39 = vector.broadcast %27 : i32 to vector<128x1xi32>
    %40 = arith.addi %29, %39 : vector<128x1xi32>
    %41 = arith.select %38, %40, %29 : vector<128x1xi1>, vector<128x1xi32>
    %cst_34 = arith.constant 0.000000e+00 : f32
    %42 = vector.broadcast %cst_34 : f32 to vector<1x64xf32>
    %c0_35 = arith.constant 0 : index
    %c0_36 = arith.constant 0 : index
    %c0_37 = arith.constant 0 : index
    %43 = vector.load %arg5[%c0_35, %c0_36, %c0_37] : memref<3x9x64xbf16, #tpu.memory_space<vmem>>, vector<1x9x64xbf16>
    %44 = vector.shape_cast %43 : vector<1x9x64xbf16> to vector<9x64xbf16>
    %cst_38 = arith.constant dense<0.000000e+00> : vector<128x64xf32>
    %45 = tpu.matmul %21, %44, %cst_38 {dimension_numbers = #tpu.dot_dimension_numbers<[1], [0], [0], [1], [0, 0, 1, 1], [], []>} : vector<128x9xbf16>, vector<9x64xbf16>, vector<128x64xf32> -> vector<128x64xf32>
    %46 = vector.extract_strided_slice %45 {offsets = [0, 0], sizes = [127, 64], strides = [1, 1]} : vector<128x64xf32> to vector<127x64xf32>
    %47 = tpu.concatenate %42, %46 in 0 : vector<1x64xf32>, vector<127x64xf32> -> vector<128x64xf32>
    %c0_i32_39 = arith.constant 0 : i32
    %48 = vector.broadcast %c0_i32_39 : i32 to vector<128x1xi32>
    %49 = arith.cmpi sgt, %41, %48 : vector<128x1xi32>
    %cst_40 = arith.constant 0.000000e+00 : f32
    %50 = vector.shape_cast %49 : vector<128x1xi1> to vector<128x1xi1>
    %51 = vector.broadcast %50 : vector<128x1xi1> to vector<128x64xi1>
    %52 = vector.broadcast %cst_40 : f32 to vector<128x64xf32>
    %53 = arith.select %51, %47, %52 : vector<128x64xi1>, vector<128x64xf32>
    %54 = arith.addf %24, %53 : vector<128x64xf32>
    %c2 = arith.constant 2 : index
    %c0_41 = arith.constant 0 : index
    %c0_42 = arith.constant 0 : index
    %55 = vector.load %arg5[%c2, %c0_41, %c0_42] : memref<3x9x64xbf16, #tpu.memory_space<vmem>>, vector<1x9x64xbf16>
    %56 = vector.shape_cast %55 : vector<1x9x64xbf16> to vector<9x64xbf16>
    %cst_43 = arith.constant dense<0.000000e+00> : vector<128x64xf32>
    %57 = tpu.matmul %21, %56, %cst_43 {dimension_numbers = #tpu.dot_dimension_numbers<[1], [0], [0], [1], [0, 0, 1, 1], [], []>} : vector<128x9xbf16>, vector<9x64xbf16>, vector<128x64xf32> -> vector<128x64xf32>
    %58 = vector.extract_strided_slice %57 {offsets = [1, 0], sizes = [127, 64], strides = [1, 1]} : vector<128x64xf32> to vector<127x64xf32>
    %59 = tpu.concatenate %58, %42 in 0 : vector<127x64xf32>, vector<1x64xf32> -> vector<128x64xf32>
    %c15_i32 = arith.constant 15 : i32
    %60 = vector.broadcast %c15_i32 : i32 to vector<128x1xi32>
    %61 = arith.cmpi slt, %41, %60 : vector<128x1xi32>
    %cst_44 = arith.constant 0.000000e+00 : f32
    %62 = vector.shape_cast %61 : vector<128x1xi1> to vector<128x1xi1>
    %63 = vector.broadcast %62 : vector<128x1xi1> to vector<128x64xi1>
    %64 = vector.broadcast %cst_44 : f32 to vector<128x64xf32>
    %65 = arith.select %63, %59, %64 : vector<128x64xi1>, vector<128x64xf32>
    %66 = arith.addf %54, %65 : vector<128x64xf32>
    %c0_45 = arith.constant 0 : index
    %c0_46 = arith.constant 0 : index
    %67 = vector.load %arg6[%c0_45, %c0_46] : memref<1x64xf32, #tpu.memory_space<vmem>>, vector<1x64xf32>
    %68 = vector.broadcast %67 : vector<1x64xf32> to vector<128x64xf32>
    %69 = arith.mulf %66, %68 : vector<128x64xf32>
    %c0_47 = arith.constant 0 : index
    %c0_48 = arith.constant 0 : index
    %70 = vector.load %arg7[%c0_47, %c0_48] : memref<1x64xf32, #tpu.memory_space<vmem>>, vector<1x64xf32>
    %71 = vector.broadcast %70 : vector<1x64xf32> to vector<128x64xf32>
    %72 = arith.addf %69, %71 : vector<128x64xf32>
    %cst_49 = arith.constant 0.000000e+00 : f32
    %73 = vector.broadcast %cst_49 : f32 to vector<128x64xf32>
    %74 = arith.maximumf %72, %73 : vector<128x64xf32>
    %75 = vector.shape_cast %74 : vector<128x64xf32> to vector<1x8x16x64xf32>
    %76 = arith.truncf %75 : vector<1x8x16x64xf32> to vector<1x8x16x64xbf16>
    %c0_50 = arith.constant 0 : index
    %c0_51 = arith.constant 0 : index
    %c0_52 = arith.constant 0 : index
    %c0_53 = arith.constant 0 : index
    %77 = vector.load %arg8[%c0_50, %c0_51, %c0_52, %c0_53] : memref<1x8x16x64xbf16, #tpu.memory_space<vmem>>, vector<1x8x16x64xbf16>
    tpu.vector_store %arg8[%c0_50, %c0_51, %c0_52, %c0_53], %76 {strides = array<i32>} : memref<1x8x16x64xbf16, #tpu.memory_space<vmem>>, vector<1x8x16x64xbf16>,
    return
  }
  func.func @transform_0(%arg0: i32, %arg1: i32) -> (i32, i32, i32, i32) {
    %c0_i32 = arith.constant 0 : i32
    %c0_i32_0 = arith.constant 0 : i32
    %c0_i32_1 = arith.constant 0 : i32
    return %arg0, %arg1, %c0_i32, %c0_i32_0 : i32, i32, i32, i32
  }
  func.func @transform_1(%arg0: i32, %arg1: i32) -> (i32, i32, i32, i32) {
    %c8_i32 = arith.constant 8 : i32
    %0 = arith.muli %arg1, %c8_i32 : i32
    %c1_i32 = arith.constant 1 : i32
    %1 = arith.subi %0, %c1_i32 : i32
    %c0_i32 = arith.constant 0 : i32
    %2 = arith.maxsi %1, %c0_i32 : i32
    %c0_i32_0 = arith.constant 0 : i32
    %c0_i32_1 = arith.constant 0 : i32
    %c0_i32_2 = arith.constant 0 : i32
    return %arg0, %2, %c0_i32_0, %c0_i32_1 : i32, i32, i32, i32
  }
  func.func @transform_2(%arg0: i32, %arg1: i32) -> (i32, i32, i32, i32) {
    %c8_i32 = arith.constant 8 : i32
    %0 = arith.muli %arg1, %c8_i32 : i32
    %c8_i32_0 = arith.constant 8 : i32
    %1 = arith.addi %0, %c8_i32_0 : i32
    %c15_i32 = arith.constant 15 : i32
    %2 = arith.minsi %1, %c15_i32 : i32
    %c0_i32 = arith.constant 0 : i32
    %c0_i32_1 = arith.constant 0 : i32
    %c0_i32_2 = arith.constant 0 : i32
    return %arg0, %2, %c0_i32, %c0_i32_1 : i32, i32, i32, i32
  }
  func.func @transform_3(%arg0: i32, %arg1: i32) -> (i32, i32, i32) {
    %c0_i32 = arith.constant 0 : i32
    %c0_i32_0 = arith.constant 0 : i32
    %c0_i32_1 = arith.constant 0 : i32
    %c0_i32_2 = arith.constant 0 : i32
    return %c0_i32, %c0_i32_0, %c0_i32_1 : i32, i32, i32
  }
  func.func @transform_4(%arg0: i32, %arg1: i32) -> (i32, i32) {
    %c0_i32 = arith.constant 0 : i32
    %c0_i32_0 = arith.constant 0 : i32
    %c0_i32_1 = arith.constant 0 : i32
    return %c0_i32, %c0_i32_0 : i32, i32
  }
  func.func @transform_5(%arg0: i32, %arg1: i32) -> (i32, i32) {
    %c0_i32 = arith.constant 0 : i32
    %c0_i32_0 = arith.constant 0 : i32
    %c0_i32_1 = arith.constant 0 : i32
    return %c0_i32, %c0_i32_0 : i32, i32
  }
  func.func @transform_6(%arg0: i32, %arg1: i32) -> (i32, i32, i32, i32) {
    %c0_i32 = arith.constant 0 : i32
    %c0_i32_0 = arith.constant 0 : i32
    %c0_i32_1 = arith.constant 0 : i32
    return %arg0, %arg1, %c0_i32, %c0_i32_0 : i32, i32, i32, i32
  }
}

</mosaic_0001>

<llo_original>
// kernel: tpu_custom_call.1
$region0: #{tpu_custom_call.1}
  #allocation0 [shape = 'u32[]', space=smem, size = 0x4, offset = 0x4, fixed_abs, tag = 'smem constant byte address 0x4 - core index']
  #allocation1 [shape = 'u32[144,128]{1,0:T(1,128)}', space=vmem, size = 0x12000, scoped, tag = 'internal scratch']
  #allocation2 [shape = 'bf16[8,16,9]{2,1,0:T(16,128)(2,1)}', space=vmem, size = 0x8000, scoped, tag = 'scratch operand']
  %s0 = inlined_call_operand.vmem [shape: bf16[2,16,16,3], index: 0, kind: input, shape index: {}]
  %s1 = inlined_call_operand.vmem [shape: bf16[2,16,16,3], index: 1, kind: input, shape index: {}]
  %s2 = inlined_call_operand.vmem [shape: bf16[2,16,16,3], index: 2, kind: input, shape index: {}]
  %s3 = inlined_call_operand.vmem [shape: bf16[3,9,64], index: 3, kind: input, shape index: {}]
  %s4 = inlined_call_operand.vmem [shape: f32[1,64], index: 4, kind: input, shape index: {}]
  %s5 = inlined_call_operand.vmem [shape: f32[1,64], index: 5, kind: input, shape index: {}]
  %s6 = inlined_call_operand.hbm [shape: bf16[2,16,16,64], index: 6, kind: output, shape index: {}]
  %s7 = sld [smem:[#allocation0]]
  $region57: #{tpu_custom_call.1} parent=0
    _
  %s9 = ssub.s32 1, %s7
  %s10 = scalar_select 0, %s9, %s7
  $region1: #{tpu_custom_call.1} parent=0
    #allocation3 [shape = 'u8[65536]{0}', space=vmem, size = 0x10000, scoped, tag = 'output window, operand 0']
    #allocation4 [shape = 's32[2]{0}', space=sflag, size = 0x8, scoped, tag = 'scoped memory for tpu_custom_call.1']
    %11 = vsyncpa [#allocation4], 0
    %s12 = scalar_lea.sflag [#allocation4], 1
    %13 = vsyncpa %s12, 0
    loop: start=0, step=1, limit=6
    $region2: #{tpu_custom_call.1} parent=1 // loop_pre_header
      _
    $region3: #{tpu_custom_call.1} parent=1 // loop_header
      %s15 = sphi 0, %s19
      %p16 = scmp.ge.s32.totalorder %s15, 6
      %s22 = sphi 0, %s34
      %s23 = sphi 0, %s30
      %s24 = sphi 0, %s22
      %s25 = sphi 0, %s23
      %s26 = sphi 0, %s24
      %s27 = sphi 0, %s25
      %s39 = sphi 0, %s41
      %s42 = sphi 0, %s39
      %s43 = sphi 0, %s42
      %s59 = sphi 0, %s43
      %s75 = sphi 0, %s77
      %s78 = sphi 0, %s75
      %s79 = sphi 0, %s78
      %s95 = sphi 0, %s79
      %s111 = sphi 0, %s113
      %s114 = sphi 0, %s111
      %s115 = sphi 0, %s114
      %s131 = sphi 0, %s115
      %s135 = sphi 0, %s135
      %s137 = sphi 0, %s135
      %s138 = sphi 0, %s137
      %s152 = sphi 0, %s138
      %s156 = sphi 0, %s156
      %s158 = sphi 0, %s156
      %s159 = sphi 0, %s158
      %s173 = sphi 0, %s159
      %s177 = sphi 0, %s177
      %s179 = sphi 0, %s177
      %s180 = sphi 0, %s179
      %s194 = sphi 0, %s180
      %s202 = sphi 0, %s204
      %s205 = sphi 0, %s202
      %s206 = sphi 0, %s205
      %s222 = sphi 0, %s206
    $region4: #{tpu_custom_call.1} parent=1 // loop_header_branch
      %18 = sbr.rel (%p16) target = $region8
    $region5: #{tpu_custom_call.1} parent=1 // loop_body
      %s20 = ssub.s32 %s15, 1
      %s21 = ssub.s32 %s15, 2
      %s28 = sadd.s32 1, %s23
      %p29 = scmp.ge.s32.totalorder %s28, 2
      %s30 = scalar_select %p29, 0, %s28
      %s31 = sadd.s32 1, %s22
      %s32 = scalar_select %p29, %s31, %s22
      %p33 = scmp.ge.s32.totalorder %s32, 2
      %s34 = scalar_select %p33, 0, %s32
      %s35 = ssub.s32 %s22, %s34
      %s36 = ssub.s32 %s23, %s30
      %s37 = sor.u32 %s35, %s36
      %p38 = scmp.eq.s32.totalorder %s37, 0
      %s40 = sadd.s32 %s39, 1
      %s41 = scalar_select %p38, %s39, %s40
      %p44 = pneg %p38
      %p45 = scmp.eq.s32.totalorder %s15, 3
      %p46 = por %p44, %p45
      %p47 = scmp.ne.s32.totalorder %s39, %s42
      %p48 = scmp.eq.s32.totalorder %s15, 0
      %p49 = por %p47, %p48
      %p50 = scmp.ne.s32.totalorder %s39, %s42
      %p51 = scmp.eq.s32.totalorder %s20, 3
      %p52 = por %p50, %p51
      %p53 = scmp.ne.s32.totalorder %s42, %s43
      %p54 = scmp.eq.s32.totalorder %s20, 0
      %p55 = por %p53, %p54
      %p56 = scmp.ne.s32.totalorder %s42, %s43
      %p57 = scmp.eq.s32.totalorder %s21, 3
      %p58 = por %p56, %p57
      %p60 = scmp.ne.s32.totalorder %s43, %s59
      %p61 = scmp.eq.s32.totalorder %s21, 0
      %p62 = por %p60, %p61
      %s63 = smul.u32 %s23, 8
      %s64 = ssub.s32 %s63, 1
      %p65 = scmp.gt.s32.totalorder %s64, 0
      %s66 = scalar_select %p65, %s64, 0
      %s67 = smul.u32 %s30, 8
      %s68 = ssub.s32 %s67, 1
      %p69 = scmp.gt.s32.totalorder %s68, 0
      %s70 = scalar_select %p69, %s68, 0
      %s71 = ssub.s32 %s22, %s34
      %s72 = ssub.s32 %s66, %s70
      %s73 = sor.u32 %s71, %s72
      %p74 = scmp.eq.s32.totalorder %s73, 0
      %s76 = sadd.s32 %s75, 1
      %s77 = scalar_select %p74, %s75, %s76
      %p80 = pneg %p74
      %p81 = scmp.eq.s32.totalorder %s15, 3
      %p82 = por %p80, %p81
      %p83 = scmp.ne.s32.totalorder %s75, %s78
      %p84 = scmp.eq.s32.totalorder %s15, 0
      %p85 = por %p83, %p84
      %p86 = scmp.ne.s32.totalorder %s75, %s78
      %p87 = scmp.eq.s32.totalorder %s20, 3
      %p88 = por %p86, %p87
      %p89 = scmp.ne.s32.totalorder %s78, %s79
      %p90 = scmp.eq.s32.totalorder %s20, 0
      %p91 = por %p89, %p90
      %p92 = scmp.ne.s32.totalorder %s78, %s79
      %p93 = scmp.eq.s32.totalorder %s21, 3
      %p94 = por %p92, %p93
      %p96 = scmp.ne.s32.totalorder %s79, %s95
      %p97 = scmp.eq.s32.totalorder %s21, 0
      %p98 = por %p96, %p97
      %s99 = smul.u32 %s23, 8
      %s100 = sadd.s32 %s99, 8
      %p101 = scmp.lt.s32.totalorder %s100, 15
      %s102 = scalar_select %p101, %s100, 15
      %s103 = smul.u32 %s30, 8
      %s104 = sadd.s32 %s103, 8
      %p105 = scmp.lt.s32.totalorder %s104, 15
      %s106 = scalar_select %p105, %s104, 15
      %s107 = ssub.s32 %s22, %s34
      %s108 = ssub.s32 %s102, %s106
      %s109 = sor.u32 %s107, %s108
      %p110 = scmp.eq.s32.totalorder %s109, 0
      %s112 = sadd.s32 %s111, 1
      %s113 = scalar_select %p110, %s111, %s112
      %p116 = pneg %p110
      %p117 = scmp.eq.s32.totalorder %s15, 3
      %p118 = por %p116, %p117
      %p119 = scmp.ne.s32.totalorder %s111, %s114
      %p120 = scmp.eq.s32.totalorder %s15, 0
      %p121 = por %p119, %p120
      %p122 = scmp.ne.s32.totalorder %s111, %s114
      %p123 = scmp.eq.s32.totalorder %s20, 3
      %p124 = por %p122, %p123
      %p125 = scmp.ne.s32.totalorder %s114, %s115
      %p126 = scmp.eq.s32.totalorder %s20, 0
      %p127 = por %p125, %p126
      %p128 = scmp.ne.s32.totalorder %s114, %s115
      %p129 = scmp.eq.s32.totalorder %s21, 3
      %p130 = por %p128, %p129
      %p132 = scmp.ne.s32.totalorder %s115, %s131
      %p133 = scmp.eq.s32.totalorder %s21, 0
      %p134 = por %p132, %p133
      %s136 = sadd.s32 %s135, 1
      %p139 = scmp.eq.s32.totalorder %s15, 3
      %p140 = scmp.ne.s32.totalorder %s135, %s137
      %p141 = scmp.eq.s32.totalorder %s15, 0
      %p142 = por %p140, %p141
      %p143 = scmp.ne.s32.totalorder %s135, %s137
      %p144 = scmp.eq.s32.totalorder %s20, 3
      %p145 = por %p143, %p144
      %p146 = scmp.ne.s32.totalorder %s137, %s138
      %p147 = scmp.eq.s32.totalorder %s20, 0
      %p148 = por %p146, %p147
      %p149 = scmp.ne.s32.totalorder %s137, %s138
      %p150 = scmp.eq.s32.totalorder %s21, 3
      %p151 = por %p149, %p150
      %p153 = scmp.ne.s32.totalorder %s138, %s152
      %p154 = scmp.eq.s32.totalorder %s21, 0
      %p155 = por %p153, %p154
      %s157 = sadd.s32 %s156, 1
      %p160 = scmp.eq.s32.totalorder %s15, 3
      %p161 = scmp.ne.s32.totalorder %s156, %s158
      %p162 = scmp.eq.s32.totalorder %s15, 0
      %p163 = por %p161, %p162
      %p164 = scmp.ne.s32.totalorder %s156, %s158
      %p165 = scmp.eq.s32.totalorder %s20, 3
      %p166 = por %p164, %p165
      %p167 = scmp.ne.s32.totalorder %s158, %s159
      %p168 = scmp.eq.s32.totalorder %s20, 0
      %p169 = por %p167, %p168
      %p170 = scmp.ne.s32.totalorder %s158, %s159
      %p171 = scmp.eq.s32.totalorder %s21, 3
      %p172 = por %p170, %p171
      %p174 = scmp.ne.s32.totalorder %s159, %s173
      %p175 = scmp.eq.s32.totalorder %s21, 0
      %p176 = por %p174, %p175
      %s178 = sadd.s32 %s177, 1
      %p181 = scmp.eq.s32.totalorder %s15, 3
      %p182 = scmp.ne.s32.totalorder %s177, %s179
      %p183 = scmp.eq.s32.totalorder %s15, 0
      %p184 = por %p182, %p183
      %p185 = scmp.ne.s32.totalorder %s177, %s179
      %p186 = scmp.eq.s32.totalorder %s20, 3
      %p187 = por %p185, %p186
      %p188 = scmp.ne.s32.totalorder %s179, %s180
      %p189 = scmp.eq.s32.totalorder %s20, 0
      %p190 = por %p188, %p189
      %p191 = scmp.ne.s32.totalorder %s179, %s180
      %p192 = scmp.eq.s32.totalorder %s21, 3
      %p193 = por %p191, %p192
      %p195 = scmp.ne.s32.totalorder %s180, %s194
      %p196 = scmp.eq.s32.totalorder %s21, 0
      %p197 = por %p195, %p196
      %s198 = ssub.s32 %s22, %s34
      %s199 = ssub.s32 %s23, %s30
      %s200 = sor.u32 %s198, %s199
      %p201 = scmp.eq.s32.totalorder %s200, 0
      %s203 = sadd.s32 %s202, 1
      %s204 = scalar_select %p201, %s202, %s203
      %p207 = pneg %p201
      %p208 = scmp.eq.s32.totalorder %s15, 3
      %p209 = por %p207, %p208
      %p210 = scmp.ne.s32.totalorder %s202, %s205
      %p211 = scmp.eq.s32.totalorder %s15, 0
      %p212 = por %p210, %p211
      %p213 = scmp.ne.s32.totalorder %s202, %s205
      %p214 = scmp.eq.s32.totalorder %s20, 3
      %p215 = por %p213, %p214
      %p216 = scmp.ne.s32.totalorder %s205, %s206
      %p217 = scmp.eq.s32.totalorder %s20, 0
      %p218 = por %p216, %p217
      %p219 = scmp.ne.s32.totalorder %s205, %s206
      %p220 = scmp.eq.s32.totalorder %s21, 3
      %p221 = por %p219, %p220
      %p223 = scmp.ne.s32.totalorder %s206, %s222
      %p224 = scmp.eq.s32.totalorder %s21, 0
      %p225 = por %p223, %p224
      %p226 = scmp.le.s32.totalorder 1, %s15
      %p227 = scmp.lt.s32.totalorder %s15, 5
      %p228 = pnand %p226, %p227
      %p229 = pneg %p228
      // Predicated region
      $region9: #{tpu_custom_call.1} parent=5 // pred_check
        _
      $region10: #{tpu_custom_call.1} parent=5 // pred_check_branch
        %231 = sbr.rel (%p228) target = $region12
      $region11: #{tpu_custom_call.1} parent=5 // pred_region
        %s232 = ssub.s32 %s15, 1
        // Predicated region
        $region13: #{tpu_custom_call.1} parent=11 // pred_check
          %p233 = pneg %p148
        $region14: #{tpu_custom_call.1} parent=11 // pred_check_branch
          %235 = sbr.rel (%p233) target = $region16
        $region15: #{tpu_custom_call.1} parent=11 // pred_region
          _
        $region16: #{tpu_custom_call.1} parent=11 // pred_fallthru
          _
        // Predicated region
        $region17: #{tpu_custom_call.1} parent=11 // pred_check
          %p236 = pneg %p169
        $region18: #{tpu_custom_call.1} parent=11 // pred_check_branch
          %238 = sbr.rel (%p236) target = $region20
        $region19: #{tpu_custom_call.1} parent=11 // pred_region
          _
        $region20: #{tpu_custom_call.1} parent=11 // pred_fallthru
          _
        // Predicated region
        $region21: #{tpu_custom_call.1} parent=11 // pred_check
          %p239 = pneg %p190
        $region22: #{tpu_custom_call.1} parent=11 // pred_check_branch
          %241 = sbr.rel (%p239) target = $region24
        $region23: #{tpu_custom_call.1} parent=11 // pred_region
          _
        $region24: #{tpu_custom_call.1} parent=11 // pred_fallthru
          _
      $region12: #{tpu_custom_call.1} parent=5 // pred_fallthru
        _
      %p242 = scmp.lt.s32.totalorder %s15, 4
      // Predicated region
      $region25: #{tpu_custom_call.1} parent=5 // pred_check
        %p243 = pneg %p242
      $region26: #{tpu_custom_call.1} parent=5 // pred_check_branch
        %245 = sbr.rel (%p243) target = $region28
      $region27: #{tpu_custom_call.1} parent=5 // pred_region
        // Predicated region
        $region29: #{tpu_custom_call.1} parent=27 // pred_check
          %p246 = pneg %p49
        $region30: #{tpu_custom_call.1} parent=27 // pred_check_branch
          %248 = sbr.rel (%p246) target = $region32
        $region31: #{tpu_custom_call.1} parent=27 // pred_region
          %s249 = smul.u32 8, %s23
          %p250 = scmp.lt.s32.totalorder %s22, 1
          %s251 = scalar_select %p250, %s22, 1
          %p252 = scmp.lt.s32.totalorder %s249, 15
          %s253 = scalar_select %p252, %s249, 15
          %s254 = smul.addr %s253, 2
          %s255 = smul.addr %s251, 32
          %s256 = sadd.s32 %s254, %s255
          %s257 = smul.addr %s256, 4
          %s258 = scalar_lea.vmem %s0, %s257
          %s259 = smul.u32 8, %s23
        $region32: #{tpu_custom_call.1} parent=27 // pred_fallthru
          _
        // Predicated region
        $region33: #{tpu_custom_call.1} parent=27 // pred_check
          %p260 = pneg %p85
        $region34: #{tpu_custom_call.1} parent=27 // pred_check_branch
          %262 = sbr.rel (%p260) target = $region36
        $region35: #{tpu_custom_call.1} parent=27 // pred_region
          %s263 = smul.u32 %s23, 8
          %s264 = ssub.s32 %s263, 1
          %p265 = scmp.gt.s32.totalorder %s264, 0
          %s266 = scalar_select %p265, %s264, 0
          %p267 = scmp.lt.s32.totalorder %s22, 1
          %s268 = scalar_select %p267, %s22, 1
          %p269 = scmp.lt.s32.totalorder %s266, 15
          %s270 = scalar_select %p269, %s266, 15
          %s271 = smul.addr %s270, 2
          %s272 = smul.addr %s268, 32
          %s273 = sadd.s32 %s271, %s272
          %s274 = smul.addr %s273, 4
          %s275 = scalar_lea.vmem %s1, %s274
          %s276 = smul.u32 %s23, 8
          %s277 = ssub.s32 %s276, 1
          %p278 = scmp.gt.s32.totalorder %s277, 0
          %s279 = scalar_select %p278, %s277, 0
        $region36: #{tpu_custom_call.1} parent=27 // pred_fallthru
          _
        // Predicated region
        $region37: #{tpu_custom_call.1} parent=27 // pred_check
          %p280 = pneg %p121
        $region38: #{tpu_custom_call.1} parent=27 // pred_check_branch
          %282 = sbr.rel (%p280) target = $region40
        $region39: #{tpu_custom_call.1} parent=27 // pred_region
          %s283 = smul.u32 %s23, 8
          %s284 = sadd.s32 %s283, 8
          %p285 = scmp.lt.s32.totalorder %s284, 15
          %s286 = scalar_select %p285, %s284, 15
          %p287 = scmp.lt.s32.totalorder %s22, 1
          %s288 = scalar_select %p287, %s22, 1
          %p289 = scmp.lt.s32.totalorder %s286, 15
          %s290 = scalar_select %p289, %s286, 15
          %s291 = smul.addr %s290, 2
          %s292 = smul.addr %s288, 32
          %s293 = sadd.s32 %s291, %s292
          %s294 = smul.addr %s293, 4
          %s295 = scalar_lea.vmem %s2, %s294
          %s296 = smul.u32 %s23, 8
          %s297 = sadd.s32 %s296, 8
          %p298 = scmp.lt.s32.totalorder %s297, 15
          %s299 = scalar_select %p298, %s297, 15
        $region40: #{tpu_custom_call.1} parent=27 // pred_fallthru
          _
      $region28: #{tpu_custom_call.1} parent=5 // pred_fallthru
        _
      %p300 = scmp.le.s32.totalorder 1, %s15
      %p301 = scmp.lt.s32.totalorder %s15, 5
      %p302 = pnand %p300, %p301
      %p303 = pneg %p302
      // Predicated region
      $region41: #{tpu_custom_call.1} parent=5 // pred_check
        _
      $region42: #{tpu_custom_call.1} parent=5 // pred_check_branch
        %305 = sbr.rel (%p302) target = $region44
      $region43: #{tpu_custom_call.1} parent=5 // pred_region
        %s306 = ssub.s32 %s15, 1
        %s307 = smul.u32 8, %s25
        %p308 = scmp.lt.s32.totalorder %s24, 1
        %s309 = scalar_select %p308, %s24, 1
        %p310 = scmp.lt.s32.totalorder %s307, 15
        %s311 = scalar_select %p310, %s307, 15
        %s312 = smul.addr %s311, 2
        %s313 = smul.addr %s309, 32
        %s314 = sadd.s32 %s312, %s313
        %s315 = smul.addr %s314, 4
        %s316 = scalar_lea.vmem %s0, %s315
        %p317 = pneg %p55
        %p318 = pneg %p52
        %s319 = smul.u32 %s25, 8
        %s320 = ssub.s32 %s319, 1
        %p321 = scmp.gt.s32.totalorder %s320, 0
        %s322 = scalar_select %p321, %s320, 0
        %p323 = scmp.lt.s32.totalorder %s24, 1
        %s324 = scalar_select %p323, %s24, 1
        %p325 = scmp.lt.s32.totalorder %s322, 15
        %s326 = scalar_select %p325, %s322, 15
        %s327 = smul.addr %s326, 2
        %s328 = smul.addr %s324, 32
        %s329 = sadd.s32 %s327, %s328
        %s330 = smul.addr %s329, 4
        %s331 = scalar_lea.vmem %s1, %s330
        %p332 = pneg %p91
        %p333 = pneg %p88
        %s334 = smul.u32 %s25, 8
        %s335 = sadd.s32 %s334, 8
        %p336 = scmp.lt.s32.totalorder %s335, 15
        %s337 = scalar_select %p336, %s335, 15
        %p338 = scmp.lt.s32.totalorder %s24, 1
        %s339 = scalar_select %p338, %s24, 1
        %p340 = scmp.lt.s32.totalorder %s337, 15
        %s341 = scalar_select %p340, %s337, 15
        %s342 = smul.addr %s341, 2
        %s343 = smul.addr %s339, 32
        %s344 = sadd.s32 %s342, %s343
        %s345 = smul.addr %s344, 4
        %s346 = scalar_lea.vmem %s2, %s345
        %p347 = pneg %p127
        %p348 = pneg %p124
        %p349 = pneg %p148
        %p350 = pneg %p145
        %p351 = pneg %p169
        %p352 = pneg %p166
        %p353 = pneg %p190
        %p354 = pneg %p187
        %p355 = pneg %p218
        %p356 = pneg %p215
        %s357 = sand.u32 %s205, 1
        %s358 = scalar_lea.sflag [#allocation4], %s357
        %s359 = sand.u32 %s205, 1
        %s360 = smul.addr %s359, 64
        %s361 = scalar_lea.vmem [#allocation3], %s360
        %s362 = smul.u32 8, %s25
        %p363 = scmp.lt.s32.totalorder %s24, 1
        %s364 = scalar_select %p363, %s24, 1
        %p365 = scmp.lt.s32.totalorder %s362, 15
        %s366 = scalar_select %p365, %s362, 15
        %s367 = smul.addr %s366, 2
        %s368 = smul.addr %s364, 32
        %s369 = sadd.s32 %s367, %s368
        %s370 = smul.addr %s369, 4
        %s371 = scalar_lea.vmem %s0, %s370
        %s372 = smul.u32 8, %s25
        %s373 = smul.u32 %s25, 8
        %s374 = ssub.s32 %s373, 1
        %p375 = scmp.gt.s32.totalorder %s374, 0
        %s376 = scalar_select %p375, %s374, 0
        %p377 = scmp.lt.s32.totalorder %s24, 1
        %s378 = scalar_select %p377, %s24, 1
        %p379 = scmp.lt.s32.totalorder %s376, 15
        %s380 = scalar_select %p379, %s376, 15
        %s381 = smul.addr %s380, 2
        %s382 = smul.addr %s378, 32
        %s383 = sadd.s32 %s381, %s382
        %s384 = smul.addr %s383, 4
        %s385 = scalar_lea.vmem %s1, %s384
        %s386 = smul.u32 %s25, 8
        %s387 = ssub.s32 %s386, 1
        %p388 = scmp.gt.s32.totalorder %s387, 0
        %s389 = scalar_select %p388, %s387, 0
        %s390 = smul.u32 %s25, 8
        %s391 = sadd.s32 %s390, 8
        %p392 = scmp.lt.s32.totalorder %s391, 15
        %s393 = scalar_select %p392, %s391, 15
        %p394 = scmp.lt.s32.totalorder %s24, 1
        %s395 = scalar_select %p394, %s24, 1
        %p396 = scmp.lt.s32.totalorder %s393, 15
        %s397 = scalar_select %p396, %s393, 15
        %s398 = smul.addr %s397, 2
        %s399 = smul.addr %s395, 32
        %s400 = sadd.s32 %s398, %s399
        %s401 = smul.addr %s400, 4
        %s402 = scalar_lea.vmem %s2, %s401
        %s403 = smul.u32 %s25, 8
        %s404 = sadd.s32 %s403, 8
        %p405 = scmp.lt.s32.totalorder %s404, 15
        %s406 = scalar_select %p405, %s404, 15
        %s407 = smul.u32 8, %s25
        %v409 = vld [vmem:[%s371] sm:$0xf]
        %v410 = vld [vmem:[%s371 + $0x4] sm:$0xf]
        %v411 = vld [vmem:[%s371 + $0x8] sm:$0xf]
        %v412 = vld [vmem:[%s371 + $0xc] sm:$0xf]
        %v413 = vld [vmem:[%s371 + $0x10] sm:$0xf]
        %v414 = vld [vmem:[%s371 + $0x14] sm:$0xf]
        %v415 = vld [vmem:[%s371 + $0x18] sm:$0xf]
        %v416 = vld [vmem:[%s371 + $0x1c] sm:$0xf]
        %v417 = vld [vmem:[%s371 + $0x20] sm:$0xf]
        %v418 = vld [vmem:[%s371 + $0x24] sm:$0xf]
        %v419 = vld [vmem:[%s371 + $0x28] sm:$0xf]
        %v420 = vld [vmem:[%s371 + $0x2c] sm:$0xf]
        %v421 = vld [vmem:[%s371 + $0x30] sm:$0xf]
        %v422 = vld [vmem:[%s371 + $0x34] sm:$0xf]
        %v423 = vld [vmem:[%s371 + $0x38] sm:$0xf]
        %v424 = vld [vmem:[%s371 + $0x3c] sm:$0xf]
        %p425 = scmp.gt.s32.totalorder %s25, 0
        %v426 = vld [vmem:[%s385] sm:$0xf]
        %v427 = vld [vmem:[%s385 + $0x4] sm:$0xf]
        %s428 = scalar_select %p425, 1, 0
        %v429 = vstv %s428
        %vm430 = vcmp.eq.s32.totalorder %v429, 1
        %v431 = vsel %vm430, %v426, 0
        %v432 = vsel %vm430, %v427, 0
        %p433 = scmp.lt.s32.totalorder %s25, 1
        %v434 = vld [vmem:[%s402] sm:$0xf]
        %v435 = vld [vmem:[%s402 + $0x4] sm:$0xf]
        %s436 = scalar_select %p433, 1, 0
        %v437 = vstv %s436
        %vm438 = vcmp.eq.s32.totalorder %v437, 1
        %v439 = vsel %vm438, %v434, 0
        %v440 = vsel %vm438, %v435, 0
        %v443 = vunpack.c.l.b16 %v431
        %v444 = vunpack.c.l.b16 %v432
        %v445 = vpack.c.b16 %v444, %v443
        %vm447 = vcmask 23552
        %448 = vst.msk [vmem:[#allocation2] sm:$0xff] %vm447, %v445
        %v463 = vunpack.c.l.b16 %v409
        %v464 = vunpack.c.l.b16 %v410
        %v465 = vunpack.c.l.b16 %v411
        %v466 = vunpack.c.l.b16 %v412
        %v467 = vunpack.c.l.b16 %v413
        %v468 = vunpack.c.l.b16 %v414
        %v469 = vunpack.c.l.b16 %v415
        %v470 = vunpack.c.l.b16 %v416
        %v471 = vunpack.c.l.b16 %v417
        %v472 = vunpack.c.l.b16 %v418
        %v473 = vunpack.c.l.b16 %v419
        %v474 = vunpack.c.l.b16 %v420
        %v475 = vunpack.c.l.b16 %v421
        %v476 = vunpack.c.l.b16 %v422
        %v477 = vpack.c.b16 %v464, %v463
        %v478 = vpack.c.b16 %v466, %v465
        %v479 = vpack.c.b16 %v468, %v467
        %v480 = vpack.c.b16 %v470, %v469
        %v481 = vpack.c.b16 %v472, %v471
        %v482 = vpack.c.b16 %v474, %v473
        %v483 = vpack.c.b16 %v476, %v475
        %s491 = scalar_lea.vmem [#allocation2], 8
        %492 = vst.msk [vmem:[%s491] sm:$0xff] %vm447, %v477
        %493 = vst.msk [vmem:[%s491 + $0x8] sm:$0xff] %vm447, %v478
        %494 = vst.msk [vmem:[%s491 + $0x10] sm:$0xff] %vm447, %v479
        %495 = vst.msk [vmem:[%s491 + $0x18] sm:$0xff] %vm447, %v480
        %496 = vst.msk [vmem:[%s491 + $0x20] sm:$0xff] %vm447, %v481
        %497 = vst.msk [vmem:[%s491 + $0x28] sm:$0xff] %vm447, %v482
        %498 = vst.msk [vmem:[%s491 + $0x30] sm:$0xff] %vm447, %v483
        %v501 = vunpack.c.l.b16 %v423
        %v502 = vunpack.c.l.b16 %v424
        %v503 = vpack.c.b16 %v502, %v501
        %504 = vrot.lane.b32.xlu0 %v478, 6
        %v505 = vpop.permute.xlu0 %504
        %506 = vrot.lane.b32.xlu0 %v479, 6
        %v507 = vpop.permute.xlu0 %506
        %508 = vrot.lane.b32.xlu0 %v480, 6
        %v509 = vpop.permute.xlu0 %508
        %510 = vrot.lane.b32.xlu0 %v481, 6
        %v511 = vpop.permute.xlu0 %510
        %512 = vrot.lane.b32.xlu0 %v482, 6
        %v513 = vpop.permute.xlu0 %512
        %514 = vrot.lane.b32.xlu0 %v483, 6
        %v515 = vpop.permute.xlu0 %514
        %516 = vrot.lane.b32.xlu0 %v503, 6
        %v517 = vpop.permute.xlu0 %516
        %vm525 = vcmask 72752
        %526 = vst.msk [vmem:[#allocation2] sm:$0xff] %vm525, %v505
        %527 = vst.msk [vmem:[#allocation2 + $0x8] sm:$0xff] %vm525, %v507
        %528 = vst.msk [vmem:[#allocation2 + $0x10] sm:$0xff] %vm525, %v509
        %529 = vst.msk [vmem:[#allocation2 + $0x18] sm:$0xff] %vm525, %v511
        %530 = vst.msk [vmem:[#allocation2 + $0x20] sm:$0xff] %vm525, %v513
        %531 = vst.msk [vmem:[#allocation2 + $0x28] sm:$0xff] %vm525, %v515
        %532 = vst.msk [vmem:[#allocation2 + $0x30] sm:$0xff] %vm525, %v517
        %533 = vrot.lane.b32.xlu0 %v477, 3
        %v534 = vpop.permute.xlu0 %533
        %535 = vrot.lane.b32.xlu0 %v478, 3
        %v536 = vpop.permute.xlu0 %535
        %537 = vrot.lane.b32.xlu0 %v479, 3
        %v538 = vpop.permute.xlu0 %537
        %539 = vrot.lane.b32.xlu0 %v480, 3
        %v540 = vpop.permute.xlu0 %539
        %541 = vrot.lane.b32.xlu0 %v481, 3
        %v542 = vpop.permute.xlu0 %541
        %543 = vrot.lane.b32.xlu0 %v482, 3
        %v544 = vpop.permute.xlu0 %543
        %545 = vrot.lane.b32.xlu0 %v483, 3
        %v546 = vpop.permute.xlu0 %545
        %547 = vrot.lane.b32.xlu0 %v503, 3
        %v548 = vpop.permute.xlu0 %547
        %vm557 = vcmask 48152
        %558 = vst.msk [vmem:[#allocation2] sm:$0xff] %vm557, %v534
        %559 = vst.msk [vmem:[#allocation2 + $0x8] sm:$0xff] %vm557, %v536
        %560 = vst.msk [vmem:[#allocation2 + $0x10] sm:$0xff] %vm557, %v538
        %561 = vst.msk [vmem:[#allocation2 + $0x18] sm:$0xff] %vm557, %v540
        %562 = vst.msk [vmem:[#allocation2 + $0x20] sm:$0xff] %vm557, %v542
        %563 = vst.msk [vmem:[#allocation2 + $0x28] sm:$0xff] %vm557, %v544
        %564 = vst.msk [vmem:[#allocation2 + $0x30] sm:$0xff] %vm557, %v546
        %565 = vst.msk [vmem:[#allocation2 + $0x38] sm:$0xff] %vm557, %v548
        %v568 = vunpack.c.l.b16 %v439
        %v569 = vunpack.c.l.b16 %v440
        %v570 = vpack.c.b16 %v569, %v568
        %571 = vrot.lane.b32.xlu0 %v570, 6
        %v572 = vpop.permute.xlu0 %571
        %s574 = scalar_lea.vmem [#allocation2], 56
        %575 = vst.msk [vmem:[%s574] sm:$0xff] %vm525, %v572
        %v576 = vld [vmem:[#allocation2] sm:$0xff]
        %v577 = vld [vmem:[#allocation2 + $0x8] sm:$0xff]
        %v578 = vld [vmem:[#allocation2 + $0x10] sm:$0xff]
        %v579 = vld [vmem:[#allocation2 + $0x18] sm:$0xff]
        %v580 = vld [vmem:[#allocation2 + $0x20] sm:$0xff]
        %v581 = vld [vmem:[#allocation2 + $0x28] sm:$0xff]
        %v582 = vld [vmem:[#allocation2 + $0x30] sm:$0xff]
        %v583 = vld [vmem:[#allocation2 + $0x38] sm:$0xff]
        %s584 = scalar_lea.vmem %s3, 8
        %v585 = vld [vmem:[%s584] sm:$0xf]
        %v586 = vld [vmem:[%s584 + $0x4] sm:$0x1]
        %v587 = vlaneseq
        %v588 = vshrl.u32 %v587, 7
        %v589 = vadd.s32 %v588, 8
        %v590 = vadd.s32 %v588, 16
        %v591 = vadd.s32 %v588, 24
        %v592 = vadd.s32 %v588, 32
        %v593 = vadd.s32 %v588, 40
        %v594 = vadd.s32 %v588, 48
        %v595 = vadd.s32 %v588, 56
        %v596 = vadd.s32 %v588, 64
        %v597 = vadd.s32 %v588, 72
        %v598 = vadd.s32 %v588, 80
        %v599 = vadd.s32 %v588, 88
        %v600 = vadd.s32 %v588, 96
        %v601 = vadd.s32 %v588, 104
        %v602 = vadd.s32 %v588, 112
        %v603 = vadd.s32 %v588, 120
        %vm604 = vcmp.lt.s32.totalorder %v588, 0
        %v605 = vsub.s32 0, %v588
        %v606 = vsel %vm604, %v605, %v588
        %v607 = vshrl.u32 %v606, 4
        %v608 = vand.u32 %v606, 15
        %v609 = vsub.s32 0, %v608
        %v610 = vsel %vm604, %v609, %v608
        %vm611 = vcmp.lt.s32.totalorder %v589, 0
        %v612 = vsub.s32 0, %v589
        %v613 = vsel %vm611, %v612, %v589
        %v614 = vshrl.u32 %v613, 4
        %v615 = vand.u32 %v613, 15
        %v616 = vsub.s32 0, %v615
        %v617 = vsel %vm611, %v616, %v615
        %vm618 = vcmp.lt.s32.totalorder %v590, 0
        %v619 = vsub.s32 0, %v590
        %v620 = vsel %vm618, %v619, %v590
        %v621 = vshrl.u32 %v620, 4
        %v622 = vand.u32 %v620, 15
        %v623 = vsub.s32 0, %v622
        %v624 = vsel %vm618, %v623, %v622
        %vm625 = vcmp.lt.s32.totalorder %v591, 0
        %v626 = vsub.s32 0, %v591
        %v627 = vsel %vm625, %v626, %v591
        %v628 = vshrl.u32 %v627, 4
        %v629 = vand.u32 %v627, 15
        %v630 = vsub.s32 0, %v629
        %v631 = vsel %vm625, %v630, %v629
        %vm632 = vcmp.lt.s32.totalorder %v592, 0
        %v633 = vsub.s32 0, %v592
        %v634 = vsel %vm632, %v633, %v592
        %v635 = vshrl.u32 %v634, 4
        %v636 = vand.u32 %v634, 15
        %v637 = vsub.s32 0, %v636
        %v638 = vsel %vm632, %v637, %v636
        %vm639 = vcmp.lt.s32.totalorder %v593, 0
        %v640 = vsub.s32 0, %v593
        %v641 = vsel %vm639, %v640, %v593
        %v642 = vshrl.u32 %v641, 4
        %v643 = vand.u32 %v641, 15
        %v644 = vsub.s32 0, %v643
        %v645 = vsel %vm639, %v644, %v643
        %vm646 = vcmp.lt.s32.totalorder %v594, 0
        %v647 = vsub.s32 0, %v594
        %v648 = vsel %vm646, %v647, %v594
        %v649 = vshrl.u32 %v648, 4
        %v650 = vand.u32 %v648, 15
        %v651 = vsub.s32 0, %v650
        %v652 = vsel %vm646, %v651, %v650
        %vm653 = vcmp.lt.s32.totalorder %v595, 0
        %v654 = vsub.s32 0, %v595
        %v655 = vsel %vm653, %v654, %v595
        %v656 = vshrl.u32 %v655, 4
        %v657 = vand.u32 %v655, 15
        %v658 = vsub.s32 0, %v657
        %v659 = vsel %vm653, %v658, %v657
        %vm660 = vcmp.lt.s32.totalorder %v596, 0
        %v661 = vsub.s32 0, %v596
        %v662 = vsel %vm660, %v661, %v596
        %v663 = vshrl.u32 %v662, 4
        %v664 = vand.u32 %v662, 15
        %v665 = vsub.s32 0, %v664
        %v666 = vsel %vm660, %v665, %v664
        %vm667 = vcmp.lt.s32.totalorder %v597, 0
        %v668 = vsub.s32 0, %v597
        %v669 = vsel %vm667, %v668, %v597
        %v670 = vshrl.u32 %v669, 4
        %v671 = vand.u32 %v669, 15
        %v672 = vsub.s32 0, %v671
        %v673 = vsel %vm667, %v672, %v671
        %vm674 = vcmp.lt.s32.totalorder %v598, 0
        %v675 = vsub.s32 0, %v598
        %v676 = vsel %vm674, %v675, %v598
        %v677 = vshrl.u32 %v676, 4
        %v678 = vand.u32 %v676, 15
        %v679 = vsub.s32 0, %v678
        %v680 = vsel %vm674, %v679, %v678
        %vm681 = vcmp.lt.s32.totalorder %v599, 0
        %v682 = vsub.s32 0, %v599
        %v683 = vsel %vm681, %v682, %v599
        %v684 = vshrl.u32 %v683, 4
        %v685 = vand.u32 %v683, 15
        %v686 = vsub.s32 0, %v685
        %v687 = vsel %vm681, %v686, %v685
        %vm688 = vcmp.lt.s32.totalorder %v600, 0
        %v689 = vsub.s32 0, %v600
        %v690 = vsel %vm688, %v689, %v600
        %v691 = vshrl.u32 %v690, 4
        %v692 = vand.u32 %v690, 15
        %v693 = vsub.s32 0, %v692
        %v694 = vsel %vm688, %v693, %v692
        %vm695 = vcmp.lt.s32.totalorder %v601, 0
        %v696 = vsub.s32 0, %v601
        %v697 = vsel %vm695, %v696, %v601
        %v698 = vshrl.u32 %v697, 4
        %v699 = vand.u32 %v697, 15
        %v700 = vsub.s32 0, %v699
        %v701 = vsel %vm695, %v700, %v699
        %vm702 = vcmp.lt.s32.totalorder %v602, 0
        %v703 = vsub.s32 0, %v602
        %v704 = vsel %vm702, %v703, %v602
        %v705 = vshrl.u32 %v704, 4
        %v706 = vand.u32 %v704, 15
        %v707 = vsub.s32 0, %v706
        %v708 = vsel %vm702, %v707, %v706
        %vm709 = vcmp.lt.s32.totalorder %v603, 0
        %v710 = vsub.s32 0, %v603
        %v711 = vsel %vm709, %v710, %v603
        %v712 = vshrl.u32 %v711, 4
        %v713 = vand.u32 %v711, 15
        %v714 = vsub.s32 0, %v713
        %v715 = vsel %vm709, %v714, %v713
        %vm716 = vcmp.ne.s32.totalorder %v610, 0
        %vm717 = vcmp.ne.s32.totalorder %v617, 0
        %vm718 = vcmp.ne.s32.totalorder %v624, 0
        %vm719 = vcmp.ne.s32.totalorder %v631, 0
        %vm720 = vcmp.ne.s32.totalorder %v638, 0
        %vm721 = vcmp.ne.s32.totalorder %v645, 0
        %vm722 = vcmp.ne.s32.totalorder %v652, 0
        %vm723 = vcmp.ne.s32.totalorder %v659, 0
        %vm724 = vcmp.ne.s32.totalorder %v666, 0
        %vm725 = vcmp.ne.s32.totalorder %v673, 0
        %vm726 = vcmp.ne.s32.totalorder %v680, 0
        %vm727 = vcmp.ne.s32.totalorder %v687, 0
        %vm728 = vcmp.ne.s32.totalorder %v694, 0
        %vm729 = vcmp.ne.s32.totalorder %v701, 0
        %vm730 = vcmp.ne.s32.totalorder %v708, 0
        %vm731 = vcmp.ne.s32.totalorder %v715, 0
        %vm732 = vcmp.lt.s32.totalorder %v610, 0
        %vm733 = vcmp.lt.s32.totalorder %v617, 0
        %vm734 = vcmp.lt.s32.totalorder %v624, 0
        %vm735 = vcmp.lt.s32.totalorder %v631, 0
        %vm736 = vcmp.lt.s32.totalorder %v638, 0
        %vm737 = vcmp.lt.s32.totalorder %v645, 0
        %vm738 = vcmp.lt.s32.totalorder %v652, 0
        %vm739 = vcmp.lt.s32.totalorder %v659, 0
        %vm740 = vcmp.lt.s32.totalorder %v666, 0
        %vm741 = vcmp.lt.s32.totalorder %v673, 0
        %vm742 = vcmp.lt.s32.totalorder %v680, 0
        %vm743 = vcmp.lt.s32.totalorder %v687, 0
        %vm744 = vcmp.lt.s32.totalorder %v694, 0
        %vm745 = vcmp.lt.s32.totalorder %v701, 0
        %vm746 = vcmp.lt.s32.totalorder %v708, 0
        %vm747 = vcmp.lt.s32.totalorder %v715, 0
        %vm748 = vmand %vm732, %vm716
        %vm749 = vmand %vm733, %vm717
        %vm750 = vmand %vm734, %vm718
        %vm751 = vmand %vm735, %vm719
        %vm752 = vmand %vm736, %vm720
        %vm753 = vmand %vm737, %vm721
        %vm754 = vmand %vm738, %vm722
        %vm755 = vmand %vm739, %vm723
        %vm756 = vmand %vm740, %vm724
        %vm757 = vmand %vm741, %vm725
        %vm758 = vmand %vm742, %vm726
        %vm759 = vmand %vm743, %vm727
        %vm760 = vmand %vm744, %vm728
        %vm761 = vmand %vm745, %vm729
        %vm762 = vmand %vm746, %vm730
        %vm763 = vmand %vm747, %vm731
        %v764 = vadd.s32 %v610, 16
        %v765 = vadd.s32 %v617, 16
        %v766 = vadd.s32 %v624, 16
        %v767 = vadd.s32 %v631, 16
        %v768 = vadd.s32 %v638, 16
        %v769 = vadd.s32 %v645, 16
        %v770 = vadd.s32 %v652, 16
        %v771 = vadd.s32 %v659, 16
        %v772 = vadd.s32 %v666, 16
        %v773 = vadd.s32 %v673, 16
        %v774 = vadd.s32 %v680, 16
        %v775 = vadd.s32 %v687, 16
        %v776 = vadd.s32 %v694, 16
        %v777 = vadd.s32 %v701, 16
        %v778 = vadd.s32 %v708, 16
        %v779 = vadd.s32 %v715, 16
        %v780 = vsel %vm748, %v764, %v610
        %v781 = vsel %vm749, %v765, %v617
        %v782 = vsel %vm750, %v766, %v624
        %v783 = vsel %vm751, %v767, %v631
        %v784 = vsel %vm752, %v768, %v638
        %v785 = vsel %vm753, %v769, %v645
        %v786 = vsel %vm754, %v770, %v652
        %v787 = vsel %vm755, %v771, %v659
        %v788 = vsel %vm756, %v772, %v666
        %v789 = vsel %vm757, %v773, %v673
        %v790 = vsel %vm758, %v774, %v680
        %v791 = vsel %vm759, %v775, %v687
        %v792 = vsel %vm760, %v776, %v694
        %v793 = vsel %vm761, %v777, %v701
        %v794 = vsel %vm762, %v778, %v708
        %v795 = vsel %vm763, %v779, %v715
        %v796 = vld [vmem:[%s3] sm:$0xf]
        %v797 = vld [vmem:[%s3 + $0x4] sm:$0x1]
        %v800 = vunpack.c.l.b16 %v796
        %v801 = vunpack.c.l.b16 %v797
        %v802 = vpack.c.b16 %v801, %v800
        %vm803 = vcmask 72704
        %v805 = vsel %vm803, %v576, 0
        %v808 = vsel %vm803, %v577, 0
        %v811 = vsel %vm803, %v578, 0
        %v814 = vsel %vm803, %v579, 0
        %v817 = vsel %vm803, %v580, 0
        %v820 = vsel %vm803, %v581, 0
        %v823 = vsel %vm803, %v582, 0
        %v826 = vsel %vm803, %v583, 0
        %vm828 = vcmask 1043456
        %vm829 = vcmask 1044480
        %v830 = vsel %vm828, 4294967295, 65535
        %v831 = vsel %vm829, %v830, 0
        %v833 = vand.u32 %v802, %v831
        %835 = vmatprep.subr.bf16.mxu0 0
        %836 = vmatpush1.bf16.msra.mxu0 %v833
        %837 = vmatprep.subr.bf16.mxu0 0
        %838 = vmatpush1.bf16.msra.mxu0 0
        %839 = vmatprep.subr.bf16.mxu0 0
        %840 = vmatpush1.bf16.msra.mxu0 0
        %841 = vmatprep.subr.bf16.mxu0 0
        %842 = vmatpush1.bf16.msra.mxu0 0
        %843 = vmatprep.subr.bf16.mxu0 0
        %844 = vmatpush1.bf16.msra.mxu0 0
        %845 = vmatprep.subr.bf16.mxu0 0
        %846 = vmatpush1.bf16.msra.mxu0 0
        %847 = vmatprep.subr.bf16.mxu0 0
        %848 = vmatpush1.bf16.msra.mxu0 0
        %849 = vmatprep.subr.bf16.mxu0 0
        %850 = vmatpush1.bf16.msra.mxu0 0
        %851 = vmatprep.subr.bf16.mxu0 0
        %852 = vmatpush1.bf16.msra.mxu0 0
        %853 = vmatprep.subr.bf16.mxu0 0
        %854 = vmatpush1.bf16.msra.mxu0 0
        %855 = vmatprep.subr.bf16.mxu0 0
        %856 = vmatpush1.bf16.msra.mxu0 0
        %857 = vmatprep.subr.bf16.mxu0 0
        %858 = vmatpush1.bf16.msra.mxu0 0
        %859 = vmatprep.subr.bf16.mxu0 0
        %860 = vmatpush1.bf16.msra.mxu0 0
        %861 = vmatprep.subr.bf16.mxu0 0
        %862 = vmatpush1.bf16.msra.mxu0 0
        %863 = vmatprep.subr.bf16.mxu0 0
        %864 = vmatpush1.bf16.msra.mxu0 0
        %865 = vmatprep.subr.bf16.mxu0 0
        %866 = vmatpush1.bf16.msra.mxu0 0
        %867 = vmatprep.mubr.bf16.mxu0 0
        %868 = vmatmul.mubr.bf16.gmra.mrb[0].mxu0 %v805
        %v869 = vpop.f32.mrb[0].mxu0
        %v870 = vadd.f32 0.0, %v869
        %v871 = vpop.f32.mrb[0].mxu0
        %v872 = vpop.f32.mrb[0].mxu0
        %v873 = vadd.f32 0.0, %v872
        %v874 = vpop.f32.mrb[0].mxu0
        %875 = vmatprep.mubr.bf16.mxu0 0
        %876 = vmatmul.mubr.bf16.gmra.mrb[0].mxu0 %v808
        %v877 = vpop.f32.mrb[0].mxu0
        %v878 = vadd.f32 0.0, %v877
        %v879 = vpop.f32.mrb[0].mxu0
        %v880 = vpop.f32.mrb[0].mxu0
        %v881 = vadd.f32 0.0, %v880
        %v882 = vpop.f32.mrb[0].mxu0
        %883 = vmatprep.mubr.bf16.mxu0 0
        %884 = vmatmul.mubr.bf16.gmra.mrb[0].mxu0 %v811
        %v885 = vpop.f32.mrb[0].mxu0
        %v886 = vadd.f32 0.0, %v885
        %v887 = vpop.f32.mrb[0].mxu0
        %v888 = vpop.f32.mrb[0].mxu0
        %v889 = vadd.f32 0.0, %v888
        %v890 = vpop.f32.mrb[0].mxu0
        %891 = vmatprep.mubr.bf16.mxu0 0
        %892 = vmatmul.mubr.bf16.gmra.mrb[0].mxu0 %v814
        %v893 = vpop.f32.mrb[0].mxu0
        %v894 = vadd.f32 0.0, %v893
        %v895 = vpop.f32.mrb[0].mxu0
        %v896 = vpop.f32.mrb[0].mxu0
        %v897 = vadd.f32 0.0, %v896
        %v898 = vpop.f32.mrb[0].mxu0
        %899 = vmatprep.mubr.bf16.mxu0 0
        %900 = vmatmul.mubr.bf16.gmra.mrb[0].mxu0 %v817
        %v901 = vpop.f32.mrb[0].mxu0
        %v902 = vadd.f32 0.0, %v901
        %v903 = vpop.f32.mrb[0].mxu0
        %v904 = vpop.f32.mrb[0].mxu0
        %v905 = vadd.f32 0.0, %v904
        %v906 = vpop.f32.mrb[0].mxu0
        %907 = vmatprep.mubr.bf16.mxu0 0
        %908 = vmatmul.mubr.bf16.gmra.mrb[0].mxu0 %v820
        %v909 = vpop.f32.mrb[0].mxu0
        %v910 = vadd.f32 0.0, %v909
        %v911 = vpop.f32.mrb[0].mxu0
        %v912 = vpop.f32.mrb[0].mxu0
        %v913 = vadd.f32 0.0, %v912
        %v914 = vpop.f32.mrb[0].mxu0
        %915 = vmatprep.mubr.bf16.mxu0 0
        %916 = vmatmul.mubr.bf16.gmra.mrb[0].mxu0 %v823
        %v917 = vpop.f32.mrb[0].mxu0
        %v918 = vadd.f32 0.0, %v917
        %v919 = vpop.f32.mrb[0].mxu0
        %v920 = vpop.f32.mrb[0].mxu0
        %v921 = vadd.f32 0.0, %v920
        %v922 = vpop.f32.mrb[0].mxu0
        %923 = vmatprep.mubr.bf16.mxu0 0
        %924 = vmatmul.mubr.bf16.gmra.mrb[0].mxu0 %v826
        %v925 = vpop.f32.mrb[0].mxu0
        %v926 = vadd.f32 0.0, %v925
        %v927 = vpop.f32.mrb[0].mxu0
        %v928 = vpop.f32.mrb[0].mxu0
        %v929 = vadd.f32 0.0, %v928
        %v930 = vpop.f32.mrb[0].mxu0
        %931 = vdwg.mxu0
        %vm948 = vcmask 1040384
        %v949 = vrot.slane %v870, 7
        %v950 = vrot.slane %v873, 7
        %v951 = vsel %vm948, %v949, %v950
        %v952 = vrot.slane %v878, 7
        %v953 = vsel %vm948, %v950, %v952
        %v954 = vrot.slane %v881, 7
        %v955 = vsel %vm948, %v952, %v954
        %v956 = vrot.slane %v886, 7
        %v957 = vsel %vm948, %v954, %v956
        %v958 = vrot.slane %v889, 7
        %v959 = vsel %vm948, %v956, %v958
        %v960 = vrot.slane %v894, 7
        %v961 = vsel %vm948, %v958, %v960
        %v962 = vrot.slane %v897, 7
        %v963 = vsel %vm948, %v960, %v962
        %v964 = vrot.slane %v902, 7
        %v965 = vsel %vm948, %v962, %v964
        %v966 = vrot.slane %v905, 7
        %v967 = vsel %vm948, %v964, %v966
        %v968 = vrot.slane %v910, 7
        %v969 = vsel %vm948, %v966, %v968
        %v970 = vrot.slane %v913, 7
        %v971 = vsel %vm948, %v968, %v970
        %v972 = vrot.slane %v918, 7
        %v973 = vsel %vm948, %v970, %v972
        %v974 = vrot.slane %v921, 7
        %v975 = vsel %vm948, %v972, %v974
        %v976 = vrot.slane %v926, 7
        %v977 = vsel %vm948, %v974, %v976
        %v978 = vrot.slane %v929, 7
        %v979 = vsel %vm948, %v976, %v978
        %v996 = vsel %vm948, 0.0, %v949
        %vm997 = vcmp.gt.s32.totalorder %v780, 0
        %vm998 = vcmp.gt.s32.totalorder %v781, 0
        %vm999 = vcmp.gt.s32.totalorder %v782, 0
        %vm1000 = vcmp.gt.s32.totalorder %v783, 0
        %vm1001 = vcmp.gt.s32.totalorder %v784, 0
        %vm1002 = vcmp.gt.s32.totalorder %v785, 0
        %vm1003 = vcmp.gt.s32.totalorder %v786, 0
        %vm1004 = vcmp.gt.s32.totalorder %v787, 0
        %vm1005 = vcmp.gt.s32.totalorder %v788, 0
        %vm1006 = vcmp.gt.s32.totalorder %v789, 0
        %vm1007 = vcmp.gt.s32.totalorder %v790, 0
        %vm1008 = vcmp.gt.s32.totalorder %v791, 0
        %vm1009 = vcmp.gt.s32.totalorder %v792, 0
        %vm1010 = vcmp.gt.s32.totalorder %v793, 0
        %vm1011 = vcmp.gt.s32.totalorder %v794, 0
        %vm1012 = vcmp.gt.s32.totalorder %v795, 0
        %v1013 = vsel %vm997, 1, 0
        %v1014 = vsel %vm998, 1, 0
        %v1015 = vsel %vm999, 1, 0
        %v1016 = vsel %vm1000, 1, 0
        %v1017 = vsel %vm1001, 1, 0
        %v1018 = vsel %vm1002, 1, 0
        %v1019 = vsel %vm1003, 1, 0
        %v1020 = vsel %vm1004, 1, 0
        %v1021 = vsel %vm1005, 1, 0
        %v1022 = vsel %vm1006, 1, 0
        %v1023 = vsel %vm1007, 1, 0
        %v1024 = vsel %vm1008, 1, 0
        %v1025 = vsel %vm1009, 1, 0
        %v1026 = vsel %vm1010, 1, 0
        %v1027 = vsel %vm1011, 1, 0
        %v1028 = vsel %vm1012, 1, 0
        %vm1029 = vcmp.eq.s32.totalorder %v1013, 1
        %vm1030 = vcmp.eq.s32.totalorder %v1014, 1
        %vm1031 = vcmp.eq.s32.totalorder %v1015, 1
        %vm1032 = vcmp.eq.s32.totalorder %v1016, 1
        %vm1033 = vcmp.eq.s32.totalorder %v1017, 1
        %vm1034 = vcmp.eq.s32.totalorder %v1018, 1
        %vm1035 = vcmp.eq.s32.totalorder %v1019, 1
        %vm1036 = vcmp.eq.s32.totalorder %v1020, 1
        %vm1037 = vcmp.eq.s32.totalorder %v1021, 1
        %vm1038 = vcmp.eq.s32.totalorder %v1022, 1
        %vm1039 = vcmp.eq.s32.totalorder %v1023, 1
        %vm1040 = vcmp.eq.s32.totalorder %v1024, 1
        %vm1041 = vcmp.eq.s32.totalorder %v1025, 1
        %vm1042 = vcmp.eq.s32.totalorder %v1026, 1
        %vm1043 = vcmp.eq.s32.totalorder %v1027, 1
        %vm1044 = vcmp.eq.s32.totalorder %v1028, 1
        %v1045 = vsel %vm1029, %v996, 0.0
        %v1046 = vsel %vm1030, %v951, 0.0
        %v1047 = vsel %vm1031, %v953, 0.0
        %v1048 = vsel %vm1032, %v955, 0.0
        %v1049 = vsel %vm1033, %v957, 0.0
        %v1050 = vsel %vm1034, %v959, 0.0
        %v1051 = vsel %vm1035, %v961, 0.0
        %v1052 = vsel %vm1036, %v963, 0.0
        %v1053 = vsel %vm1037, %v965, 0.0
        %v1054 = vsel %vm1038, %v967, 0.0
        %v1055 = vsel %vm1039, %v969, 0.0
        %v1056 = vsel %vm1040, %v971, 0.0
        %v1057 = vsel %vm1041, %v973, 0.0
        %v1058 = vsel %vm1042, %v975, 0.0
        %v1059 = vsel %vm1043, %v977, 0.0
        %v1060 = vsel %vm1044, %v979, 0.0
        %v1063 = vunpack.c.l.b16 %v585
        %v1064 = vunpack.c.l.b16 %v586
        %v1065 = vpack.c.b16 %v1064, %v1063
        %v1067 = vand.u32 %v1065, %v831
        %1069 = vmatprep.subr.bf16.mxu0 0
        %1070 = vmatpush1.bf16.msra.mxu0 %v1067
        %1071 = vmatprep.subr.bf16.mxu0 0
        %1072 = vmatpush1.bf16.msra.mxu0 0
        %1073 = vmatprep.subr.bf16.mxu0 0
        %1074 = vmatpush1.bf16.msra.mxu0 0
        %1075 = vmatprep.subr.bf16.mxu0 0
        %1076 = vmatpush1.bf16.msra.mxu0 0
        %1077 = vmatprep.subr.bf16.mxu0 0
        %1078 = vmatpush1.bf16.msra.mxu0 0
        %1079 = vmatprep.subr.bf16.mxu0 0
        %1080 = vmatpush1.bf16.msra.mxu0 0
        %1081 = vmatprep.subr.bf16.mxu0 0
        %1082 = vmatpush1.bf16.msra.mxu0 0
        %1083 = vmatprep.subr.bf16.mxu0 0
        %1084 = vmatpush1.bf16.msra.mxu0 0
        %1085 = vmatprep.subr.bf16.mxu0 0
        %1086 = vmatpush1.bf16.msra.mxu0 0
        %1087 = vmatprep.subr.bf16.mxu0 0
        %1088 = vmatpush1.bf16.msra.mxu0 0
        %1089 = vmatprep.subr.bf16.mxu0 0
        %1090 = vmatpush1.bf16.msra.mxu0 0
        %1091 = vmatprep.subr.bf16.mxu0 0
        %1092 = vmatpush1.bf16.msra.mxu0 0
        %1093 = vmatprep.subr.bf16.mxu0 0
        %1094 = vmatpush1.bf16.msra.mxu0 0
        %1095 = vmatprep.subr.bf16.mxu0 0
        %1096 = vmatpush1.bf16.msra.mxu0 0
        %1097 = vmatprep.subr.bf16.mxu0 0
        %1098 = vmatpush1.bf16.msra.mxu0 0
        %1099 = vmatprep.subr.bf16.mxu0 0
        %1100 = vmatpush1.bf16.msra.mxu0 0
        %1101 = vmatprep.mubr.bf16.mxu0 0
        %1102 = vmatmul.mubr.bf16.gmra.mrb[0].mxu0 %v805
        %v1103 = vpop.f32.mrb[0].mxu0
        %v1104 = vadd.f32 %v1045, %v1103
        %v1105 = vpop.f32.mrb[0].mxu0
        %v1106 = vpop.f32.mrb[0].mxu0
        %v1107 = vadd.f32 %v1046, %v1106
        %v1108 = vpop.f32.mrb[0].mxu0
        %1109 = vmatprep.mubr.bf16.mxu0 0
        %1110 = vmatmul.mubr.bf16.gmra.mrb[0].mxu0 %v808
        %v1111 = vpop.f32.mrb[0].mxu0
        %v1112 = vadd.f32 %v1047, %v1111
        %v1113 = vpop.f32.mrb[0].mxu0
        %v1114 = vpop.f32.mrb[0].mxu0
        %v1115 = vadd.f32 %v1048, %v1114
        %v1116 = vpop.f32.mrb[0].mxu0
        %1117 = vmatprep.mubr.bf16.mxu0 0
        %1118 = vmatmul.mubr.bf16.gmra.mrb[0].mxu0 %v811
        %v1119 = vpop.f32.mrb[0].mxu0
        %v1120 = vadd.f32 %v1049, %v1119
        %v1121 = vpop.f32.mrb[0].mxu0
        %v1122 = vpop.f32.mrb[0].mxu0
        %v1123 = vadd.f32 %v1050, %v1122
        %v1124 = vpop.f32.mrb[0].mxu0
        %1125 = vmatprep.mubr.bf16.mxu0 0
        %1126 = vmatmul.mubr.bf16.gmra.mrb[0].mxu0 %v814
        %v1127 = vpop.f32.mrb[0].mxu0
        %v1128 = vadd.f32 %v1051, %v1127
        %v1129 = vpop.f32.mrb[0].mxu0
        %v1130 = vpop.f32.mrb[0].mxu0
        %v1131 = vadd.f32 %v1052, %v1130
        %v1132 = vpop.f32.mrb[0].mxu0
        %1133 = vmatprep.mubr.bf16.mxu0 0
        %1134 = vmatmul.mubr.bf16.gmra.mrb[0].mxu0 %v817
        %v1135 = vpop.f32.mrb[0].mxu0
        %v1136 = vadd.f32 %v1053, %v1135
        %v1137 = vpop.f32.mrb[0].mxu0
        %v1138 = vpop.f32.mrb[0].mxu0
        %v1139 = vadd.f32 %v1054, %v1138
        %v1140 = vpop.f32.mrb[0].mxu0
        %1141 = vmatprep.mubr.bf16.mxu0 0
        %1142 = vmatmul.mubr.bf16.gmra.mrb[0].mxu0 %v820
        %v1143 = vpop.f32.mrb[0].mxu0
        %v1144 = vadd.f32 %v1055, %v1143
        %v1145 = vpop.f32.mrb[0].mxu0
        %v1146 = vpop.f32.mrb[0].mxu0
        %v1147 = vadd.f32 %v1056, %v1146
        %v1148 = vpop.f32.mrb[0].mxu0
        %1149 = vmatprep.mubr.bf16.mxu0 0
        %1150 = vmatmul.mubr.bf16.gmra.mrb[0].mxu0 %v823
        %v1151 = vpop.f32.mrb[0].mxu0
        %v1152 = vadd.f32 %v1057, %v1151
        %v1153 = vpop.f32.mrb[0].mxu0
        %v1154 = vpop.f32.mrb[0].mxu0
        %v1155 = vadd.f32 %v1058, %v1154
        %v1156 = vpop.f32.mrb[0].mxu0
        %1157 = vmatprep.mubr.bf16.mxu0 0
        %1158 = vmatmul.mubr.bf16.gmra.mrb[0].mxu0 %v826
        %v1159 = vpop.f32.mrb[0].mxu0
        %v1160 = vadd.f32 %v1059, %v1159
        %v1161 = vpop.f32.mrb[0].mxu0
        %v1162 = vpop.f32.mrb[0].mxu0
        %v1163 = vadd.f32 %v1060, %v1162
        %v1164 = vpop.f32.mrb[0].mxu0
        %1165 = vdwg.mxu0
        %s1166 = scalar_lea.vmem %s3, 16
        %v1167 = vld [vmem:[%s1166] sm:$0xf]
        %v1168 = vld [vmem:[%s1166 + $0x4] sm:$0x1]
        %v1171 = vunpack.c.l.b16 %v1167
        %v1172 = vunpack.c.l.b16 %v1168
        %v1173 = vpack.c.b16 %v1172, %v1171
        %v1175 = vand.u32 %v1173, %v831
        %1177 = vmatprep.subr.bf16.mxu0 0
        %1178 = vmatpush1.bf16.msra.mxu0 %v1175
        %1179 = vmatprep.subr.bf16.mxu0 0
        %1180 = vmatpush1.bf16.msra.mxu0 0
        %1181 = vmatprep.subr.bf16.mxu0 0
        %1182 = vmatpush1.bf16.msra.mxu0 0
        %1183 = vmatprep.subr.bf16.mxu0 0
        %1184 = vmatpush1.bf16.msra.mxu0 0
        %1185 = vmatprep.subr.bf16.mxu0 0
        %1186 = vmatpush1.bf16.msra.mxu0 0
        %1187 = vmatprep.subr.bf16.mxu0 0
        %1188 = vmatpush1.bf16.msra.mxu0 0
        %1189 = vmatprep.subr.bf16.mxu0 0
        %1190 = vmatpush1.bf16.msra.mxu0 0
        %1191 = vmatprep.subr.bf16.mxu0 0
        %1192 = vmatpush1.bf16.msra.mxu0 0
        %1193 = vmatprep.subr.bf16.mxu0 0
        %1194 = vmatpush1.bf16.msra.mxu0 0
        %1195 = vmatprep.subr.bf16.mxu0 0
        %1196 = vmatpush1.bf16.msra.mxu0 0
        %1197 = vmatprep.subr.bf16.mxu0 0
        %1198 = vmatpush1.bf16.msra.mxu0 0
        %1199 = vmatprep.subr.bf16.mxu0 0
        %1200 = vmatpush1.bf16.msra.mxu0 0
        %1201 = vmatprep.subr.bf16.mxu0 0
        %1202 = vmatpush1.bf16.msra.mxu0 0
        %1203 = vmatprep.subr.bf16.mxu0 0
        %1204 = vmatpush1.bf16.msra.mxu0 0
        %1205 = vmatprep.subr.bf16.mxu0 0
        %1206 = vmatpush1.bf16.msra.mxu0 0
        %1207 = vmatprep.subr.bf16.mxu0 0
        %1208 = vmatpush1.bf16.msra.mxu0 0
        %1209 = vmatprep.mubr.bf16.mxu0 0
        %1210 = vmatmul.mubr.bf16.gmra.mrb[0].mxu0 %v805
        %v1211 = vpop.f32.mrb[0].mxu0
        %v1212 = vadd.f32 0.0, %v1211
        %v1213 = vpop.f32.mrb[0].mxu0
        %v1214 = vpop.f32.mrb[0].mxu0
        %v1215 = vadd.f32 0.0, %v1214
        %v1216 = vpop.f32.mrb[0].mxu0
        %1217 = vmatprep.mubr.bf16.mxu0 0
        %1218 = vmatmul.mubr.bf16.gmra.mrb[0].mxu0 %v808
        %v1219 = vpop.f32.mrb[0].mxu0
        %v1220 = vadd.f32 0.0, %v1219
        %v1221 = vpop.f32.mrb[0].mxu0
        %v1222 = vpop.f32.mrb[0].mxu0
        %v1223 = vadd.f32 0.0, %v1222
        %v1224 = vpop.f32.mrb[0].mxu0
        %1225 = vmatprep.mubr.bf16.mxu0 0
        %1226 = vmatmul.mubr.bf16.gmra.mrb[0].mxu0 %v811
        %v1227 = vpop.f32.mrb[0].mxu0
        %v1228 = vadd.f32 0.0, %v1227
        %v1229 = vpop.f32.mrb[0].mxu0
        %v1230 = vpop.f32.mrb[0].mxu0
        %v1231 = vadd.f32 0.0, %v1230
        %v1232 = vpop.f32.mrb[0].mxu0
        %1233 = vmatprep.mubr.bf16.mxu0 0
        %1234 = vmatmul.mubr.bf16.gmra.mrb[0].mxu0 %v814
        %v1235 = vpop.f32.mrb[0].mxu0
        %v1236 = vadd.f32 0.0, %v1235
        %v1237 = vpop.f32.mrb[0].mxu0
        %v1238 = vpop.f32.mrb[0].mxu0
        %v1239 = vadd.f32 0.0, %v1238
        %v1240 = vpop.f32.mrb[0].mxu0
        %1241 = vmatprep.mubr.bf16.mxu0 0
        %1242 = vmatmul.mubr.bf16.gmra.mrb[0].mxu0 %v817
        %v1243 = vpop.f32.mrb[0].mxu0
        %v1244 = vadd.f32 0.0, %v1243
        %v1245 = vpop.f32.mrb[0].mxu0
        %v1246 = vpop.f32.mrb[0].mxu0
        %v1247 = vadd.f32 0.0, %v1246
        %v1248 = vpop.f32.mrb[0].mxu0
        %1249 = vmatprep.mubr.bf16.mxu0 0
        %1250 = vmatmul.mubr.bf16.gmra.mrb[0].mxu0 %v820
        %v1251 = vpop.f32.mrb[0].mxu0
        %v1252 = vadd.f32 0.0, %v1251
        %v1253 = vpop.f32.mrb[0].mxu0
        %v1254 = vpop.f32.mrb[0].mxu0
        %v1255 = vadd.f32 0.0, %v1254
        %v1256 = vpop.f32.mrb[0].mxu0
        %1257 = vmatprep.mubr.bf16.mxu0 0
        %1258 = vmatmul.mubr.bf16.gmra.mrb[0].mxu0 %v823
        %v1259 = vpop.f32.mrb[0].mxu0
        %v1260 = vadd.f32 0.0, %v1259
        %v1261 = vpop.f32.mrb[0].mxu0
        %v1262 = vpop.f32.mrb[0].mxu0
        %v1263 = vadd.f32 0.0, %v1262
        %v1264 = vpop.f32.mrb[0].mxu0
        %1265 = vmatprep.mubr.bf16.mxu0 0
        %1266 = vmatmul.mubr.bf16.gmra.mrb[0].mxu0 %v826
        %v1267 = vpop.f32.mrb[0].mxu0
        %v1268 = vadd.f32 0.0, %v1267
        %v1269 = vpop.f32.mrb[0].mxu0
        %v1270 = vpop.f32.mrb[0].mxu0
        %v1271 = vadd.f32 0.0, %v1270
        %v1272 = vpop.f32.mrb[0].mxu0
        %1273 = vdwg.mxu0
        %vm1290 = vcmask 1046528
        %v1291 = vrot.slane %v1212, 1
        %v1292 = vrot.slane %v1215, 1
        %v1293 = vsel %vm1290, %v1291, %v1292
        %v1294 = vrot.slane %v1220, 1
        %v1295 = vsel %vm1290, %v1292, %v1294
        %v1296 = vrot.slane %v1223, 1
        %v1297 = vsel %vm1290, %v1294, %v1296
        %v1298 = vrot.slane %v1228, 1
        %v1299 = vsel %vm1290, %v1296, %v1298
        %v1300 = vrot.slane %v1231, 1
        %v1301 = vsel %vm1290, %v1298, %v1300
        %v1302 = vrot.slane %v1236, 1
        %v1303 = vsel %vm1290, %v1300, %v1302
        %v1304 = vrot.slane %v1239, 1
        %v1305 = vsel %vm1290, %v1302, %v1304
        %v1306 = vrot.slane %v1244, 1
        %v1307 = vsel %vm1290, %v1304, %v1306
        %v1308 = vrot.slane %v1247, 1
        %v1309 = vsel %vm1290, %v1306, %v1308
        %v1310 = vrot.slane %v1252, 1
        %v1311 = vsel %vm1290, %v1308, %v1310
        %v1312 = vrot.slane %v1255, 1
        %v1313 = vsel %vm1290, %v1310, %v1312
        %v1314 = vrot.slane %v1260, 1
        %v1315 = vsel %vm1290, %v1312, %v1314
        %v1316 = vrot.slane %v1263, 1
        %v1317 = vsel %vm1290, %v1314, %v1316
        %v1318 = vrot.slane %v1268, 1
        %v1319 = vsel %vm1290, %v1316, %v1318
        %v1320 = vrot.slane %v1271, 1
        %v1321 = vsel %vm1290, %v1318, %v1320
        %v1338 = vsel %vm1290, %v1320, 0.0
        %vm1339 = vcmp.lt.s32.totalorder %v780, 15
        %vm1340 = vcmp.lt.s32.totalorder %v781, 15
        %vm1341 = vcmp.lt.s32.totalorder %v782, 15
        %vm1342 = vcmp.lt.s32.totalorder %v783, 15
        %vm1343 = vcmp.lt.s32.totalorder %v784, 15
        %vm1344 = vcmp.lt.s32.totalorder %v785, 15
        %vm1345 = vcmp.lt.s32.totalorder %v786, 15
        %vm1346 = vcmp.lt.s32.totalorder %v787, 15
        %vm1347 = vcmp.lt.s32.totalorder %v788, 15
        %vm1348 = vcmp.lt.s32.totalorder %v789, 15
        %vm1349 = vcmp.lt.s32.totalorder %v790, 15
        %vm1350 = vcmp.lt.s32.totalorder %v791, 15
        %vm1351 = vcmp.lt.s32.totalorder %v792, 15
        %vm1352 = vcmp.lt.s32.totalorder %v793, 15
        %vm1353 = vcmp.lt.s32.totalorder %v794, 15
        %vm1354 = vcmp.lt.s32.totalorder %v795, 15
        %v1355 = vsel %vm1339, 1, 0
        %v1356 = vsel %vm1340, 1, 0
        %v1357 = vsel %vm1341, 1, 0
        %v1358 = vsel %vm1342, 1, 0
        %v1359 = vsel %vm1343, 1, 0
        %v1360 = vsel %vm1344, 1, 0
        %v1361 = vsel %vm1345, 1, 0
        %v1362 = vsel %vm1346, 1, 0
        %v1363 = vsel %vm1347, 1, 0
        %v1364 = vsel %vm1348, 1, 0
        %v1365 = vsel %vm1349, 1, 0
        %v1366 = vsel %vm1350, 1, 0
        %v1367 = vsel %vm1351, 1, 0
        %v1368 = vsel %vm1352, 1, 0
        %v1369 = vsel %vm1353, 1, 0
        %v1370 = vsel %vm1354, 1, 0
        %vm1371 = vcmp.eq.s32.totalorder %v1355, 1
        %vm1372 = vcmp.eq.s32.totalorder %v1356, 1
        %vm1373 = vcmp.eq.s32.totalorder %v1357, 1
        %vm1374 = vcmp.eq.s32.totalorder %v1358, 1
        %vm1375 = vcmp.eq.s32.totalorder %v1359, 1
        %vm1376 = vcmp.eq.s32.totalorder %v1360, 1
        %vm1377 = vcmp.eq.s32.totalorder %v1361, 1
        %vm1378 = vcmp.eq.s32.totalorder %v1362, 1
        %vm1379 = vcmp.eq.s32.totalorder %v1363, 1
        %vm1380 = vcmp.eq.s32.totalorder %v1364, 1
        %vm1381 = vcmp.eq.s32.totalorder %v1365, 1
        %vm1382 = vcmp.eq.s32.totalorder %v1366, 1
        %vm1383 = vcmp.eq.s32.totalorder %v1367, 1
        %vm1384 = vcmp.eq.s32.totalorder %v1368, 1
        %vm1385 = vcmp.eq.s32.totalorder %v1369, 1
        %vm1386 = vcmp.eq.s32.totalorder %v1370, 1
        %v1387 = vsel %vm1371, %v1293, 0.0
        %v1388 = vsel %vm1372, %v1295, 0.0
        %v1389 = vsel %vm1373, %v1297, 0.0
        %v1390 = vsel %vm1374, %v1299, 0.0
        %v1391 = vsel %vm1375, %v1301, 0.0
        %v1392 = vsel %vm1376, %v1303, 0.0
        %v1393 = vsel %vm1377, %v1305, 0.0
        %v1394 = vsel %vm1378, %v1307, 0.0
        %v1395 = vsel %vm1379, %v1309, 0.0
        %v1396 = vsel %vm1380, %v1311, 0.0
        %v1397 = vsel %vm1381, %v1313, 0.0
        %v1398 = vsel %vm1382, %v1315, 0.0
        %v1399 = vsel %vm1383, %v1317, 0.0
        %v1400 = vsel %vm1384, %v1319, 0.0
        %v1401 = vsel %vm1385, %v1321, 0.0
        %v1402 = vsel %vm1386, %v1338, 0.0
        %v1403 = vadd.f32 %v1104, %v1387
        %v1404 = vadd.f32 %v1107, %v1388
        %v1405 = vadd.f32 %v1112, %v1389
        %v1406 = vadd.f32 %v1115, %v1390
        %v1407 = vadd.f32 %v1120, %v1391
        %v1408 = vadd.f32 %v1123, %v1392
        %v1409 = vadd.f32 %v1128, %v1393
        %v1410 = vadd.f32 %v1131, %v1394
        %v1411 = vadd.f32 %v1136, %v1395
        %v1412 = vadd.f32 %v1139, %v1396
        %v1413 = vadd.f32 %v1144, %v1397
        %v1414 = vadd.f32 %v1147, %v1398
        %v1415 = vadd.f32 %v1152, %v1399
        %v1416 = vadd.f32 %v1155, %v1400
        %v1417 = vadd.f32 %v1160, %v1401
        %v1418 = vadd.f32 %v1163, %v1402
        %v1419 = vld [vmem:[%s4] sm:$0x1]
        %v1421 = vlaneseq
        %v1422 = vshrl.u32 %v1421, 7
        %v1423 = vsub.s32 0, %v1422
        %v1424 = vrot.slane %v1419, %v1423
        %v1426 = vmul.f32 %v1403, %v1424
        %v1427 = vmul.f32 %v1404, %v1424
        %v1428 = vmul.f32 %v1405, %v1424
        %v1429 = vmul.f32 %v1406, %v1424
        %v1430 = vmul.f32 %v1407, %v1424
        %v1431 = vmul.f32 %v1408, %v1424
        %v1432 = vmul.f32 %v1409, %v1424
        %v1433 = vmul.f32 %v1410, %v1424
        %v1434 = vmul.f32 %v1411, %v1424
        %v1435 = vmul.f32 %v1412, %v1424
        %v1436 = vmul.f32 %v1413, %v1424
        %v1437 = vmul.f32 %v1414, %v1424
        %v1438 = vmul.f32 %v1415, %v1424
        %v1439 = vmul.f32 %v1416, %v1424
        %v1440 = vmul.f32 %v1417, %v1424
        %v1441 = vmul.f32 %v1418, %v1424
        %v1442 = vld [vmem:[%s5] sm:$0x1]
        %v1444 = vlaneseq
        %v1445 = vshrl.u32 %v1444, 7
        %v1446 = vsub.s32 0, %v1445
        %v1447 = vrot.slane %v1442, %v1446
        %v1449 = vadd.f32 %v1426, %v1447
        %v1450 = vadd.f32 %v1427, %v1447
        %v1451 = vadd.f32 %v1428, %v1447
        %v1452 = vadd.f32 %v1429, %v1447
        %v1453 = vadd.f32 %v1430, %v1447
        %v1454 = vadd.f32 %v1431, %v1447
        %v1455 = vadd.f32 %v1432, %v1447
        %v1456 = vadd.f32 %v1433, %v1447
        %v1457 = vadd.f32 %v1434, %v1447
        %v1458 = vadd.f32 %v1435, %v1447
        %v1459 = vadd.f32 %v1436, %v1447
        %v1460 = vadd.f32 %v1437, %v1447
        %v1461 = vadd.f32 %v1438, %v1447
        %v1462 = vadd.f32 %v1439, %v1447
        %v1463 = vadd.f32 %v1440, %v1447
        %v1464 = vadd.f32 %v1441, %v1447
        %v1465 = vmax.f32 %v1449, 0.0
        %v1466 = vmax.f32 %v1450, 0.0
        %v1467 = vmax.f32 %v1451, 0.0
        %v1468 = vmax.f32 %v1452, 0.0
        %v1469 = vmax.f32 %v1453, 0.0
        %v1470 = vmax.f32 %v1454, 0.0
        %v1471 = vmax.f32 %v1455, 0.0
        %v1472 = vmax.f32 %v1456, 0.0
        %v1473 = vmax.f32 %v1457, 0.0
        %v1474 = vmax.f32 %v1458, 0.0
        %v1475 = vmax.f32 %v1459, 0.0
        %v1476 = vmax.f32 %v1460, 0.0
        %v1477 = vmax.f32 %v1461, 0.0
        %v1478 = vmax.f32 %v1462, 0.0
        %v1479 = vmax.f32 %v1463, 0.0
        %v1480 = vmax.f32 %v1464, 0.0
        %v1481 = vpack.c.bf16 %v1466, %v1465
        %v1482 = vpack.c.bf16 %v1468, %v1467
        %v1483 = vpack.c.bf16 %v1470, %v1469
        %v1484 = vpack.c.bf16 %v1472, %v1471
        %v1485 = vpack.c.bf16 %v1474, %v1473
        %v1486 = vpack.c.bf16 %v1476, %v1475
        %v1487 = vpack.c.bf16 %v1478, %v1477
        %v1488 = vpack.c.bf16 %v1480, %v1479
        %v1497 = vunpack.c.l.b16 %v1481
        %v1498 = vunpack.c.h.b16 %v1481
        %v1499 = vunpack.c.l.b16 %v1482
        %v1500 = vunpack.c.h.b16 %v1482
        %v1501 = vunpack.c.l.b16 %v1483
        %v1502 = vunpack.c.h.b16 %v1483
        %v1503 = vunpack.c.l.b16 %v1484
        %v1504 = vunpack.c.h.b16 %v1484
        %v1505 = vunpack.c.l.b16 %v1485
        %v1506 = vunpack.c.h.b16 %v1485
        %v1507 = vunpack.c.l.b16 %v1486
        %v1508 = vunpack.c.h.b16 %v1486
        %v1509 = vunpack.c.l.b16 %v1487
        %v1510 = vunpack.c.h.b16 %v1487
        %v1511 = vunpack.c.l.b16 %v1488
        %v1512 = vunpack.c.h.b16 %v1488
        %v1513 = vpack.c.b16 %v1497, %v1497
        %v1514 = vpack.c.b16 %v1498, %v1498
        %v1515 = vpack.c.b16 %v1499, %v1499
        %v1516 = vpack.c.b16 %v1500, %v1500
        %v1517 = vpack.c.b16 %v1501, %v1501
        %v1518 = vpack.c.b16 %v1502, %v1502
        %v1519 = vpack.c.b16 %v1503, %v1503
        %v1520 = vpack.c.b16 %v1504, %v1504
        %v1521 = vpack.c.b16 %v1505, %v1505
        %v1522 = vpack.c.b16 %v1506, %v1506
        %v1523 = vpack.c.b16 %v1507, %v1507
        %v1524 = vpack.c.b16 %v1508, %v1508
        %v1525 = vpack.c.b16 %v1509, %v1509
        %v1526 = vpack.c.b16 %v1510, %v1510
        %v1527 = vpack.c.b16 %v1511, %v1511
        %v1528 = vpack.c.b16 %v1512, %v1512
        %vm1545 = vcmask 519168
        %1546 = vst.msk [vmem:[%s361] sm:$0xf] %vm1545, %v1513
        %1547 = vst.msk [vmem:[%s361 + $0x4] sm:$0xf] %vm1545, %v1514
        %1548 = vst.msk [vmem:[%s361 + $0x8] sm:$0xf] %vm1545, %v1515
        %1549 = vst.msk [vmem:[%s361 + $0xc] sm:$0xf] %vm1545, %v1516
        %1550 = vst.msk [vmem:[%s361 + $0x10] sm:$0xf] %vm1545, %v1517
        %1551 = vst.msk [vmem:[%s361 + $0x14] sm:$0xf] %vm1545, %v1518
        %1552 = vst.msk [vmem:[%s361 + $0x18] sm:$0xf] %vm1545, %v1519
        %1553 = vst.msk [vmem:[%s361 + $0x1c] sm:$0xf] %vm1545, %v1520
        %1554 = vst.msk [vmem:[%s361 + $0x20] sm:$0xf] %vm1545, %v1521
        %1555 = vst.msk [vmem:[%s361 + $0x24] sm:$0xf] %vm1545, %v1522
        %1556 = vst.msk [vmem:[%s361 + $0x28] sm:$0xf] %vm1545, %v1523
        %1557 = vst.msk [vmem:[%s361 + $0x2c] sm:$0xf] %vm1545, %v1524
        %1558 = vst.msk [vmem:[%s361 + $0x30] sm:$0xf] %vm1545, %v1525
        %1559 = vst.msk [vmem:[%s361 + $0x34] sm:$0xf] %vm1545, %v1526
        %1560 = vst.msk [vmem:[%s361 + $0x38] sm:$0xf] %vm1545, %v1527
        %1561 = vst.msk [vmem:[%s361 + $0x3c] sm:$0xf] %vm1545, %v1528
        %s1562 = sand.u32 %s205, 1
        %s1563 = scalar_lea.sflag [#allocation4], %s1562
        %s1564 = sand.u32 %s205, 1
        %s1565 = smul.addr %s1564, 64
        %s1566 = scalar_lea.vmem [#allocation3], %s1565
        // Predicated region
        $region45: #{tpu_custom_call.1} parent=43 // pred_check
          %p1567 = pneg %p215
        $region46: #{tpu_custom_call.1} parent=43 // pred_check_branch
          %1569 = sbr.rel (%p1567) target = $region48
        $region47: #{tpu_custom_call.1} parent=43 // pred_region
          %s1570 = smul.u32 8, %s25
          %s1572 = ssub.s32 1024, 1024
          %1573 = vsyncadd %s1563, %s1572
          %s1574 = smul.addr %s1570, 2
          %s1575 = smul.addr %s24, 32
          %s1576 = sadd.s32 %s1574, %s1575
          %s1577 = smul.addr %s1576, 64
          %s1578 = scalar_lea.hbm %s6, %s1577
          %s1579 = sshll.u32 %s1566, 4
          %s1580 = int_to_ptr.vmem [resolvable:$true] %s1579
          %1585 = dma.vmem_to_hbm [thread:$0]  %s1580, 1024, %s1578, %s1563, 64, 64, 4
        $region48: #{tpu_custom_call.1} parent=43 // pred_fallthru
          _
      $region44: #{tpu_custom_call.1} parent=5 // pred_fallthru
        _
      %p1586 = scmp.le.s32.totalorder 2, %s15
      // Predicated region
      $region49: #{tpu_custom_call.1} parent=5 // pred_check
        %p1587 = pneg %p1586
      $region50: #{tpu_custom_call.1} parent=5 // pred_check_branch
        %1589 = sbr.rel (%p1587) target = $region52
      $region51: #{tpu_custom_call.1} parent=5 // pred_region
        %s1590 = ssub.s32 %s15, 2
        // Predicated region
        $region53: #{tpu_custom_call.1} parent=51 // pred_check
          %p1591 = pneg %p221
        $region54: #{tpu_custom_call.1} parent=51 // pred_check_branch
          %1593 = sbr.rel (%p1591) target = $region56
        $region55: #{tpu_custom_call.1} parent=51 // pred_region
          %s1594 = sand.u32 %s206, 1
          %s1595 = scalar_lea.sflag [#allocation4], %s1594
          %s1596 = sand.u32 %s206, 1
          %s1597 = smul.addr %s1596, 64
          %s1598 = scalar_lea.vmem [#allocation3], %s1597
          %1599 = dma.done %s1595, 1024
        $region56: #{tpu_custom_call.1} parent=51 // pred_fallthru
          _
      $region52: #{tpu_custom_call.1} parent=5 // pred_fallthru
        _
    $region6: #{tpu_custom_call.1} parent=1 // loop_footer
      %s19 = sadd.s32 1, %s15
    $region7: #{tpu_custom_call.1} parent=1 // loop_footer_branch
      %14 = sbr.rel target = $region3
    $region8: #{tpu_custom_call.1} parent=1 // loop_exit
      _
    %1600 = vsyncpa [#allocation4], 1
    %s1601 = scalar_lea.sflag [#allocation4], 1
    %1602 = vsyncpa %s1601, 1

</llo_original>
